<compile_context>
chip_gen: v6e
topology: v6e:2x2x1
jax: 0.10.0
libtpu: 0.0.40
codegen_flags: <defaults>
</compile_context>

<pallas_src>
import functools

import jax
import jax.numpy as jnp
from jax.experimental import pallas as pl
from jax.experimental.pallas import tpu as pltpu

IN_FEATURES = 2500
H1 = 128
H2 = 64
H2_PAD = 128           # lane-dense hidden width for fc2/fc3
OUT_FEATURES = 4
OUT_PAD = 128          # lane-dense output width; real logits are cols [:4]
DEFAULT_BLOCK_B = 1024 # batch tile cap (f32 x tile ~10 MB; ~23 MiB VMEM double-buffered)


def _cdiv(a, b):
    return (a + b - 1) // b


def _round_up(n, m):
    return _cdiv(n, m) * m


def _choose_batch_tiling(B, block_b):
    """Balanced batch tiles; prefer >=2 tiles for B>256 so the 'parallel' axis can
    shard across v7x's 2 TensorCores (near-zero cost on single-TC v5e/v6e)."""
    nt = _cdiv(B, block_b)
    if B > 256 and nt < 2:
        nt = 2
    tb = _round_up(_cdiv(B, nt), 16)
    nb = _cdiv(B, tb)
    return tb, nb, nb * tb


def policy_net_kernel(x_ref, w1_ref, b1_ref, w2_ref, b2_ref, w3_ref, b3_ref, o_ref):
    # fc1: f32 x tile cast to bf16 in-register, bf16 x bf16 -> f32 on the MXU (K = 2500).
    x = x_ref[...].astype(jnp.bfloat16)
    h1 = jnp.dot(x, w1_ref[...], preferred_element_type=jnp.float32)
    h1 = jnp.maximum(h1 + b1_ref[...], 0.0)                 # f32 bias + ReLU
    # fc2 (128 -> 128-padded; padded channels are exact zeros after ReLU).
    h2 = jnp.dot(h1.astype(jnp.bfloat16), w2_ref[...],
                 preferred_element_type=jnp.float32)
    h2 = jnp.maximum(h2 + b2_ref[...], 0.0)
    # fc3 (128-padded -> 128-padded; padded rows of w3 are zero, contribute nothing).
    h3 = jnp.dot(h2.astype(jnp.bfloat16), w3_ref[...],
                 preferred_element_type=jnp.float32)
    o_ref[...] = (h3 + b3_ref[...]).astype(o_ref.dtype)


def prepare_params(params):
    """One-time layout/dtype prep; reuse the result across calls."""
    w1, b1, w2, b2, w3, b3 = params
    bf16 = jnp.bfloat16
    w1p = w1.astype(bf16)                                                    # (2500, 128)
    w2p = jnp.pad(w2, ((0, 0), (0, H2_PAD - H2))).astype(bf16)              # (128, 128)
    b2p = jnp.pad(b2, ((0, 0), (0, H2_PAD - H2)))                           # (1, 128)
    w3p = jnp.pad(w3, ((0, H2_PAD - H2), (0, OUT_PAD - OUT_FEATURES))).astype(bf16)  # (128, 128)
    b3p = jnp.pad(b3, ((0, 0), (0, OUT_PAD - OUT_FEATURES)))                # (1, 128)
    return (w1p, b1, w2p, b2p, w3p, b3p)


@functools.partial(jax.jit, static_argnames=("block_b",))
def policy_net_forward(x, prepared_params, block_b=DEFAULT_BLOCK_B):
    """x: (B, 2500) float32 -> (B, 4) float32."""
    w1p, b1, w2p, b2p, w3p, b3p = prepared_params
    B = x.shape[0]

    tb, nb, b_pad = _choose_batch_tiling(B, block_b)
    if b_pad != B:
        # Batch-dim-only pad (at most tb-1 dead rows); the feature dim is NOT padded.
        x = jnp.pad(x, ((0, b_pad - B), (0, 0)))

    def const(shape):
        # Block index never changes -> stays VMEM-resident across the whole grid.
        return pl.BlockSpec(shape, lambda i: (0, 0))

    out = pl.pallas_call(
        policy_net_kernel,
        out_shape=jax.ShapeDtypeStruct((b_pad, OUT_PAD), jnp.float32),
        grid_spec=pltpu.PrefetchScalarGridSpec(
            num_scalar_prefetch=0,
            grid=(nb,),
            in_specs=[
                pl.BlockSpec((tb, IN_FEATURES), lambda i: (i, 0)),  # x batch tile, full K
                const((IN_FEATURES, H1)),                           # w1 (resident)
                const((1, H1)),                                     # b1
                const((H1, H2_PAD)),                                # w2 (N padded to 128)
                const((1, H2_PAD)),                                 # b2
                const((H2_PAD, OUT_PAD)),                           # w3 (padded to 128x128)
                const((1, OUT_PAD)),                                # b3
            ],
            out_specs=pl.BlockSpec((tb, OUT_PAD), lambda i: (i, 0)),
        ),
        compiler_params=pltpu.CompilerParams(
            # Batch axis shards across v7x's 2 TensorCores when nb >= 2.
            dimension_semantics=("parallel",),
            # ~23 MiB actual footprint at tb=1024; 48 MiB cap is safe on v7x (64 MiB
            # physical) and leaves headroom.  v5e/v6e could raise this with larger tiles.
            vmem_limit_bytes=48 << 20,
        ),
    )(x, w1p, b1, w2p, b2p, w3p, b3p)

    return out[:B, :OUT_FEATURES]


def init_params(key):
    """PyTorch nn.Linear default init (uniform +/- 1/sqrt(fan_in)); weights stored (in, out)."""
    def linear(k, fan_in, fan_out):
        kw, kb = jax.random.split(k)
        bound = 1.0 / jnp.sqrt(jnp.asarray(fan_in, jnp.float32))
        w = jax.random.uniform(kw, (fan_in, fan_out), jnp.float32, -bound, bound)
        b = jax.random.uniform(kb, (1, fan_out), jnp.float32, -bound, bound)
        return w, b

    k1, k2, k3 = jax.random.split(key, 3)
    w1, b1 = linear(k1, IN_FEATURES, H1)
    w2, b2 = linear(k2, H1, H2)
    w3, b3 = linear(k3, H2, OUT_FEATURES)
    return (w1, b1, w2, b2, w3, b3)


def reference_forward_f32(x, params):
    w1, b1, w2, b2, w3, b3 = params
    h1 = jnp.maximum(x @ w1 + b1, 0.0)
    h2 = jnp.maximum(h1 @ w2 + b2, 0.0)
    return h2 @ w3 + b3


def reference_forward_bf16(x, params):
    """Same numerics as the kernel: bf16 operands, f32 accumulation / bias / ReLU."""
    w1, b1, w2, b2, w3, b3 = params
    bf16, f32 = jnp.bfloat16, jnp.float32
    h1 = jnp.dot(x.astype(bf16), w1.astype(bf16), preferred_element_type=f32)
    h1 = jnp.maximum(h1 + b1, 0.0)
    h2 = jnp.dot(h1.astype(bf16), w2.astype(bf16), preferred_element_type=f32)
    h2 = jnp.maximum(h2 + b2, 0.0)
    h3 = jnp.dot(h2.astype(bf16), w3.astype(bf16), preferred_element_type=f32)
    return h3 + b3


def _check(x, params, prepared):
    out = jax.block_until_ready(policy_net_forward(x, prepared))
    assert out.shape == (x.shape[0], OUT_FEATURES)
    assert out.dtype == jnp.float32
    # Tight check vs. a reference with identical bf16-in / f32-acc numerics.
    ref_bf16 = reference_forward_bf16(x, params)
    assert jnp.allclose(out, ref_bf16, atol=1e-3, rtol=1e-3), float(
        jnp.max(jnp.abs(out - ref_bf16)))
    # Looser sanity check vs. the pure-f32 PyTorch-module semantics.
    ref_f32 = reference_forward_f32(x, params)
    assert jnp.allclose(out, ref_f32, atol=5e-2, rtol=5e-2), float(
        jnp.max(jnp.abs(out - ref_f32)))
    return out


if __name__ == "__main__":
    key = jax.random.PRNGKey(0)
    kx1, kx2, kp = jax.random.split(key, 3)

    params = init_params(kp)
    prepared = prepare_params(params)

    # Small primary case (batch = 2), single tile with batch-dim padding.
    x_small = jax.random.normal(kx1, (2, IN_FEATURES), jnp.float32)
    _check(x_small, params, prepared)

    # Awkward batch exercising the balanced multi-tile (nb = 2, dual-TC) path.
    x_multi = jax.random.normal(kx2, (300, IN_FEATURES), jnp.float32)
    _check(x_multi, params, prepared)

    print("KERNEL_OK")
</pallas_src>

<mosaic_0001>
module attributes {stable_mosaic.version = 11 : i64} {
  func.func @policy_net_kernel(%arg0: i32, %arg1: memref<16x2500xf32, #tpu.memory_space<vmem>>, %arg2: memref<2500x128xbf16, #tpu.memory_space<vmem>>, %arg3: memref<1x128xf32, #tpu.memory_space<vmem>>, %arg4: memref<128x128xbf16, #tpu.memory_space<vmem>>, %arg5: memref<1x128xf32, #tpu.memory_space<vmem>>, %arg6: memref<128x128xbf16, #tpu.memory_space<vmem>>, %arg7: memref<1x128xf32, #tpu.memory_space<vmem>>, %arg8: memref<16x128xf32, #tpu.memory_space<vmem>>) attributes {dimension_semantics = [#tpu.dimension_semantics<parallel>], iteration_bounds = array<i64: 1>, scalar_prefetch = 0 : i64, scratch_operands = 0 : i64, tpu.core_type = #tpu.core_type<tc>, window_params = [{transform_indices = @transform_0, window_bounds = array<i64: 16, 2500>}, {pipeline_mode = #tpu.pipeline_mode<synchronous>, transform_indices = @transform_1, window_bounds = array<i64: 2500, 128>}, {pipeline_mode = #tpu.pipeline_mode<synchronous>, transform_indices = @transform_2, window_bounds = array<i64: 1, 128>}, {pipeline_mode = #tpu.pipeline_mode<synchronous>, transform_indices = @transform_3, window_bounds = array<i64: 128, 128>}, {pipeline_mode = #tpu.pipeline_mode<synchronous>, transform_indices = @transform_4, window_bounds = array<i64: 1, 128>}, {pipeline_mode = #tpu.pipeline_mode<synchronous>, transform_indices = @transform_5, window_bounds = array<i64: 128, 128>}, {pipeline_mode = #tpu.pipeline_mode<synchronous>, transform_indices = @transform_6, window_bounds = array<i64: 1, 128>}, {transform_indices = @transform_7, window_bounds = array<i64: 16, 128>}]} {
    %c0 = arith.constant 0 : index
    %c0_0 = arith.constant 0 : index
    %0 = vector.load %arg1[%c0, %c0_0] : memref<16x2500xf32, #tpu.memory_space<vmem>>, vector<16x2500xf32>
    %1 = arith.truncf %0 : vector<16x2500xf32> to vector<16x2500xbf16>
    %c0_1 = arith.constant 0 : index
    %c0_2 = arith.constant 0 : index
    %2 = vector.load %arg2[%c0_1, %c0_2] : memref<2500x128xbf16, #tpu.memory_space<vmem>>, vector<2500x128xbf16>
    %cst = arith.constant dense<0.000000e+00> : vector<16x128xf32>
    %3 = tpu.matmul %1, %2, %cst {dimension_numbers = #tpu.dot_dimension_numbers<[1], [0], [0], [1], [0, 0, 1, 1], [], []>} : vector<16x2500xbf16>, vector<2500x128xbf16>, vector<16x128xf32> -> vector<16x128xf32>
    %c0_3 = arith.constant 0 : index
    %c0_4 = arith.constant 0 : index
    %4 = vector.load %arg3[%c0_3, %c0_4] : memref<1x128xf32, #tpu.memory_space<vmem>>, vector<1x128xf32>
    %5 = vector.broadcast %4 : vector<1x128xf32> to vector<16x128xf32>
    %6 = arith.addf %3, %5 : vector<16x128xf32>
    %cst_5 = arith.constant 0.000000e+00 : f32
    %7 = vector.broadcast %cst_5 : f32 to vector<16x128xf32>
    %8 = arith.maximumf %6, %7 : vector<16x128xf32>
    %9 = arith.truncf %8 : vector<16x128xf32> to vector<16x128xbf16>
    %c0_6 = arith.constant 0 : index
    %c0_7 = arith.constant 0 : index
    %10 = vector.load %arg4[%c0_6, %c0_7] : memref<128x128xbf16, #tpu.memory_space<vmem>>, vector<128x128xbf16>
    %cst_8 = arith.constant dense<0.000000e+00> : vector<16x128xf32>
    %11 = tpu.matmul %9, %10, %cst_8 {dimension_numbers = #tpu.dot_dimension_numbers<[1], [0], [0], [1], [0, 0, 1, 1], [], []>} : vector<16x128xbf16>, vector<128x128xbf16>, vector<16x128xf32> -> vector<16x128xf32>
    %c0_9 = arith.constant 0 : index
    %c0_10 = arith.constant 0 : index
    %12 = vector.load %arg5[%c0_9, %c0_10] : memref<1x128xf32, #tpu.memory_space<vmem>>, vector<1x128xf32>
    %13 = vector.broadcast %12 : vector<1x128xf32> to vector<16x128xf32>
    %14 = arith.addf %11, %13 : vector<16x128xf32>
    %cst_11 = arith.constant 0.000000e+00 : f32
    %15 = vector.broadcast %cst_11 : f32 to vector<16x128xf32>
    %16 = arith.maximumf %14, %15 : vector<16x128xf32>
    %17 = arith.truncf %16 : vector<16x128xf32> to vector<16x128xbf16>
    %c0_12 = arith.constant 0 : index
    %c0_13 = arith.constant 0 : index
    %18 = vector.load %arg6[%c0_12, %c0_13] : memref<128x128xbf16, #tpu.memory_space<vmem>>, vector<128x128xbf16>
    %cst_14 = arith.constant dense<0.000000e+00> : vector<16x128xf32>
    %19 = tpu.matmul %17, %18, %cst_14 {dimension_numbers = #tpu.dot_dimension_numbers<[1], [0], [0], [1], [0, 0, 1, 1], [], []>} : vector<16x128xbf16>, vector<128x128xbf16>, vector<16x128xf32> -> vector<16x128xf32>
    %c0_15 = arith.constant 0 : index
    %c0_16 = arith.constant 0 : index
    %20 = vector.load %arg7[%c0_15, %c0_16] : memref<1x128xf32, #tpu.memory_space<vmem>>, vector<1x128xf32>
    %21 = vector.broadcast %20 : vector<1x128xf32> to vector<16x128xf32>
    %22 = arith.addf %19, %21 : vector<16x128xf32>
    %c0_17 = arith.constant 0 : index
    %c0_18 = arith.constant 0 : index
    %23 = vector.load %arg8[%c0_17, %c0_18] : memref<16x128xf32, #tpu.memory_space<vmem>>, vector<16x128xf32>
    tpu.vector_store %arg8[%c0_17, %c0_18], %22 {strides = array<i32>} : memref<16x128xf32, #tpu.memory_space<vmem>>, vector<16x128xf32>,
    return
  }
  func.func @transform_0(%arg0: i32) -> (i32, i32) {
    %c0_i32 = arith.constant 0 : i32
    %c0_i32_0 = arith.constant 0 : i32
    return %arg0, %c0_i32 : i32, i32
  }
  func.func @transform_1(%arg0: i32) -> (i32, i32) {
    %c0_i32 = arith.constant 0 : i32
    %c0_i32_0 = arith.constant 0 : i32
    %c0_i32_1 = arith.constant 0 : i32
    return %c0_i32, %c0_i32_0 : i32, i32
  }
  func.func @transform_2(%arg0: i32) -> (i32, i32) {
    %c0_i32 = arith.constant 0 : i32
    %c0_i32_0 = arith.constant 0 : i32
    %c0_i32_1 = arith.constant 0 : i32
    return %c0_i32, %c0_i32_0 : i32, i32
  }
  func.func @transform_3(%arg0: i32) -> (i32, i32) {
    %c0_i32 = arith.constant 0 : i32
    %c0_i32_0 = arith.constant 0 : i32
    %c0_i32_1 = arith.constant 0 : i32
    return %c0_i32, %c0_i32_0 : i32, i32
  }
  func.func @transform_4(%arg0: i32) -> (i32, i32) {
    %c0_i32 = arith.constant 0 : i32
    %c0_i32_0 = arith.constant 0 : i32
    %c0_i32_1 = arith.constant 0 : i32
    return %c0_i32, %c0_i32_0 : i32, i32
  }
  func.func @transform_5(%arg0: i32) -> (i32, i32) {
    %c0_i32 = arith.constant 0 : i32
    %c0_i32_0 = arith.constant 0 : i32
    %c0_i32_1 = arith.constant 0 : i32
    return %c0_i32, %c0_i32_0 : i32, i32
  }
  func.func @transform_6(%arg0: i32) -> (i32, i32) {
    %c0_i32 = arith.constant 0 : i32
    %c0_i32_0 = arith.constant 0 : i32
    %c0_i32_1 = arith.constant 0 : i32
    return %c0_i32, %c0_i32_0 : i32, i32
  }
  func.func @transform_7(%arg0: i32) -> (i32, i32) {
    %c0_i32 = arith.constant 0 : i32
    %c0_i32_0 = arith.constant 0 : i32
    return %arg0, %c0_i32 : i32, i32
  }
}

</mosaic_0001>

<llo_original>
// kernel: policy_net_forward.1
$region0: #{policy_net_forward.1}
  #allocation0 [shape = 'u32[]', space=smem, size = 0x4, offset = 0x4, fixed_abs, tag = 'smem constant byte address 0x4 - core index']
  #allocation1 [shape = 'u32[144,128]{1,0:T(1,128)}', space=vmem, size = 0x12000, scoped, tag = 'internal scratch']
  %s0 = inlined_call_operand.vmem [shape: f32[16,2500], index: 0, kind: input, shape index: {}]
  %s1 = inlined_call_operand.hbm [shape: bf16[2500,128], index: 1, kind: input, shape index: {}]
  %s2 = inlined_call_operand.vmem [shape: f32[1,128], index: 2, kind: input, shape index: {}]
  %s3 = inlined_call_operand.vmem [shape: bf16[128,128], index: 3, kind: input, shape index: {}]
  %s4 = inlined_call_operand.vmem [shape: f32[1,128], index: 4, kind: input, shape index: {}]
  %s5 = inlined_call_operand.vmem [shape: bf16[128,128], index: 5, kind: input, shape index: {}]
  %s6 = inlined_call_operand.vmem [shape: f32[1,128], index: 6, kind: input, shape index: {}]
  %s7 = inlined_call_operand.vmem [shape: f32[16,128], index: 7, kind: output, shape index: {}]
  %s8 = sld [smem:[#allocation0]]
  $region42: #{policy_net_forward.1} parent=0
    _
  %s10 = ssub.s32 1, %s8
  %s11 = scalar_select 0, %s10, %s8
  $region1: #{policy_net_forward.1} parent=0
    #allocation2 [shape = 'u8[641024]{0}', space=vmem, size = 0x9c800, scoped, tag = 'input window, operand 1, single buffered']
    #allocation3 [shape = 's32[1]{0}', space=sflag, size = 0x4, scoped, tag = 'scoped memory for policy_net_forward.1']
    %12 = vsyncpa [#allocation3], 0
    // Predicated region
    $region2: #{policy_net_forward.1} parent=1 // pred_check
      _
    $region3: #{policy_net_forward.1} parent=1 // pred_check_branch
      %14 = sbr.rel (0) target = $region5
    $region4: #{policy_net_forward.1} parent=1 // pred_region
      _
    $region5: #{policy_net_forward.1} parent=1 // pred_fallthru
      _
    // Predicated region
    $region6: #{policy_net_forward.1} parent=1 // pred_check
      _
    $region7: #{policy_net_forward.1} parent=1 // pred_check_branch
      %16 = sbr.rel (0) target = $region9
    $region8: #{policy_net_forward.1} parent=1 // pred_region
      %s18 = ssub.s32 20032, 20032
      %19 = vsyncadd [#allocation3], %s18
      %s20 = sshll.u32 [#allocation2], 4
      %s21 = int_to_ptr.vmem [resolvable:$true] %s20
      %26 = dma.hbm_to_vmem [thread:$0]  %s1, 20032, %s21, [#allocation3], 64, 64, 4
    $region9: #{policy_net_forward.1} parent=1 // pred_fallthru
      _
    // Predicated region
    $region10: #{policy_net_forward.1} parent=1 // pred_check
      _
    $region11: #{policy_net_forward.1} parent=1 // pred_check_branch
      %28 = sbr.rel (0) target = $region13
    $region12: #{policy_net_forward.1} parent=1 // pred_region
      _
    $region13: #{policy_net_forward.1} parent=1 // pred_fallthru
      _
    // Predicated region
    $region14: #{policy_net_forward.1} parent=1 // pred_check
      _
    $region15: #{policy_net_forward.1} parent=1 // pred_check_branch
      %30 = sbr.rel (0) target = $region17
    $region16: #{policy_net_forward.1} parent=1 // pred_region
      _
    $region17: #{policy_net_forward.1} parent=1 // pred_fallthru
      _
    // Predicated region
    $region18: #{policy_net_forward.1} parent=1 // pred_check
      _
    $region19: #{policy_net_forward.1} parent=1 // pred_check_branch
      %32 = sbr.rel (0) target = $region21
    $region20: #{policy_net_forward.1} parent=1 // pred_region
      _
    $region21: #{policy_net_forward.1} parent=1 // pred_fallthru
      _
    // Predicated region
    $region22: #{policy_net_forward.1} parent=1 // pred_check
      _
    $region23: #{policy_net_forward.1} parent=1 // pred_check_branch
      %34 = sbr.rel (0) target = $region25
    $region24: #{policy_net_forward.1} parent=1 // pred_region
      _
    $region25: #{policy_net_forward.1} parent=1 // pred_fallthru
      _
    // Predicated region
    $region26: #{policy_net_forward.1} parent=1 // pred_check
      _
    $region27: #{policy_net_forward.1} parent=1 // pred_check_branch
      %36 = sbr.rel (0) target = $region29
    $region28: #{policy_net_forward.1} parent=1 // pred_region
      _
    $region29: #{policy_net_forward.1} parent=1 // pred_fallthru
      _
    // Predicated region
    $region30: #{policy_net_forward.1} parent=1 // pred_check
      _
    $region31: #{policy_net_forward.1} parent=1 // pred_check_branch
      %38 = sbr.rel (0) target = $region33
    $region32: #{policy_net_forward.1} parent=1 // pred_region
      %39 = dma.done [#allocation3], 20032
    $region33: #{policy_net_forward.1} parent=1 // pred_fallthru
      _
    %v41 = vld [vmem:[%s0] sm:$0xff]
    %v42 = vld [vmem:[%s0 + $0x8] sm:$0xff]
    %v43 = vld [vmem:[%s0 + $0x10] sm:$0xff]
    %v44 = vld [vmem:[%s0 + $0x18] sm:$0xff]
    %v45 = vld [vmem:[%s0 + $0x20] sm:$0xff]
    %v46 = vld [vmem:[%s0 + $0x28] sm:$0xff]
    %v47 = vld [vmem:[%s0 + $0x30] sm:$0xff]
    %v48 = vld [vmem:[%s0 + $0x38] sm:$0xff]
    %v49 = vld [vmem:[%s0 + $0x40] sm:$0xff]
    %v50 = vld [vmem:[%s0 + $0x48] sm:$0xff]
    %v51 = vld [vmem:[%s0 + $0x50] sm:$0xff]
    %v52 = vld [vmem:[%s0 + $0x58] sm:$0xff]
    %v53 = vld [vmem:[%s0 + $0x60] sm:$0xff]
    %v54 = vld [vmem:[%s0 + $0x68] sm:$0xff]
    %v55 = vld [vmem:[%s0 + $0x70] sm:$0xff]
    %v56 = vld [vmem:[%s0 + $0x78] sm:$0xff]
    %v57 = vld [vmem:[%s0 + $0x80] sm:$0xff]
    %v58 = vld [vmem:[%s0 + $0x88] sm:$0xff]
    %v59 = vld [vmem:[%s0 + $0x90] sm:$0xff]
    %v60 = vld [vmem:[%s0 + $0x98] sm:$0xff]
    %v61 = vld [vmem:[%s0 + $0xa0] sm:$0xff]
    %v62 = vld [vmem:[%s0 + $0xa8] sm:$0xff]
    %v63 = vld [vmem:[%s0 + $0xb0] sm:$0xff]
    %v64 = vld [vmem:[%s0 + $0xb8] sm:$0xff]
    %v65 = vld [vmem:[%s0 + $0xc0] sm:$0xff]
    %v66 = vld [vmem:[%s0 + $0xc8] sm:$0xff]
    %v67 = vld [vmem:[%s0 + $0xd0] sm:$0xff]
    %v68 = vld [vmem:[%s0 + $0xd8] sm:$0xff]
    %v69 = vld [vmem:[%s0 + $0xe0] sm:$0xff]
    %v70 = vld [vmem:[%s0 + $0xe8] sm:$0xff]
    %v71 = vld [vmem:[%s0 + $0xf0] sm:$0xff]
    %v72 = vld [vmem:[%s0 + $0xf8] sm:$0xff]
    %v73 = vld [vmem:[%s0 + $0x100] sm:$0xff]
    %v74 = vld [vmem:[%s0 + $0x108] sm:$0xff]
    %v75 = vld [vmem:[%s0 + $0x110] sm:$0xff]
    %v76 = vld [vmem:[%s0 + $0x118] sm:$0xff]
    %v77 = vld [vmem:[%s0 + $0x120] sm:$0xff]
    %v78 = vld [vmem:[%s0 + $0x128] sm:$0xff]
    %v79 = vld [vmem:[%s0 + $0x130] sm:$0xff]
    %v80 = vld [vmem:[%s0 + $0x138] sm:$0xff]
    %v81 = vpack.c.bf16 %v61, %v41
    %v82 = vpack.c.bf16 %v62, %v42
    %v83 = vpack.c.bf16 %v63, %v43
    %v84 = vpack.c.bf16 %v64, %v44
    %v85 = vpack.c.bf16 %v65, %v45
    %v86 = vpack.c.bf16 %v66, %v46
    %v87 = vpack.c.bf16 %v67, %v47
    %v88 = vpack.c.bf16 %v68, %v48
    %v89 = vpack.c.bf16 %v69, %v49
    %v90 = vpack.c.bf16 %v70, %v50
    %v91 = vpack.c.bf16 %v71, %v51
    %v92 = vpack.c.bf16 %v72, %v52
    %v93 = vpack.c.bf16 %v73, %v53
    %v94 = vpack.c.bf16 %v74, %v54
    %v95 = vpack.c.bf16 %v75, %v55
    %v96 = vpack.c.bf16 %v76, %v56
    %v97 = vpack.c.bf16 %v77, %v57
    %v98 = vpack.c.bf16 %v78, %v58
    %v99 = vpack.c.bf16 %v79, %v59
    %v100 = vpack.c.bf16 %v80, %v60
    %v101 = vld [vmem:[#allocation2] sm:$0xf]
    %v102 = vld [vmem:[#allocation2 + $0x4] sm:$0xf]
    %v103 = vld [vmem:[#allocation2 + $0x8] sm:$0xf]
    %v104 = vld [vmem:[#allocation2 + $0xc] sm:$0xf]
    %v105 = vld [vmem:[#allocation2 + $0x10] sm:$0xf]
    %v106 = vld [vmem:[#allocation2 + $0x14] sm:$0xf]
    %v107 = vld [vmem:[#allocation2 + $0x18] sm:$0xf]
    %v108 = vld [vmem:[#allocation2 + $0x1c] sm:$0xf]
    %v109 = vld [vmem:[#allocation2 + $0x20] sm:$0xf]
    %v110 = vld [vmem:[#allocation2 + $0x24] sm:$0xf]
    %v111 = vld [vmem:[#allocation2 + $0x28] sm:$0xf]
    %v112 = vld [vmem:[#allocation2 + $0x2c] sm:$0xf]
    %v113 = vld [vmem:[#allocation2 + $0x30] sm:$0xf]
    %v114 = vld [vmem:[#allocation2 + $0x34] sm:$0xf]
    %v115 = vld [vmem:[#allocation2 + $0x38] sm:$0xf]
    %v116 = vld [vmem:[#allocation2 + $0x3c] sm:$0xf]
    %v117 = vld [vmem:[#allocation2 + $0x40] sm:$0xf]
    %v118 = vld [vmem:[#allocation2 + $0x44] sm:$0xf]
    %v119 = vld [vmem:[#allocation2 + $0x48] sm:$0xf]
    %v120 = vld [vmem:[#allocation2 + $0x4c] sm:$0xf]
    %v121 = vld [vmem:[#allocation2 + $0x50] sm:$0xf]
    %v122 = vld [vmem:[#allocation2 + $0x54] sm:$0xf]
    %v123 = vld [vmem:[#allocation2 + $0x58] sm:$0xf]
    %v124 = vld [vmem:[#allocation2 + $0x5c] sm:$0xf]
    %v125 = vld [vmem:[#allocation2 + $0x60] sm:$0xf]
    %v126 = vld [vmem:[#allocation2 + $0x64] sm:$0xf]
    %v127 = vld [vmem:[#allocation2 + $0x68] sm:$0xf]
    %v128 = vld [vmem:[#allocation2 + $0x6c] sm:$0xf]
    %v129 = vld [vmem:[#allocation2 + $0x70] sm:$0xf]
    %v130 = vld [vmem:[#allocation2 + $0x74] sm:$0xf]
    %v131 = vld [vmem:[#allocation2 + $0x78] sm:$0xf]
    %v132 = vld [vmem:[#allocation2 + $0x7c] sm:$0xf]
    %v133 = vld [vmem:[#allocation2 + $0x80] sm:$0xf]
    %v134 = vld [vmem:[#allocation2 + $0x84] sm:$0xf]
    %v135 = vld [vmem:[#allocation2 + $0x88] sm:$0xf]
    %v136 = vld [vmem:[#allocation2 + $0x8c] sm:$0xf]
    %v137 = vld [vmem:[#allocation2 + $0x90] sm:$0xf]
    %v138 = vld [vmem:[#allocation2 + $0x94] sm:$0xf]
    %v139 = vld [vmem:[#allocation2 + $0x98] sm:$0xf]
    %v140 = vld [vmem:[#allocation2 + $0x9c] sm:$0xf]
    %v141 = vld [vmem:[#allocation2 + $0xa0] sm:$0xf]
    %v142 = vld [vmem:[#allocation2 + $0xa4] sm:$0xf]
    %v143 = vld [vmem:[#allocation2 + $0xa8] sm:$0xf]
    %v144 = vld [vmem:[#allocation2 + $0xac] sm:$0xf]
    %v145 = vld [vmem:[#allocation2 + $0xb0] sm:$0xf]
    %v146 = vld [vmem:[#allocation2 + $0xb4] sm:$0xf]
    %v147 = vld [vmem:[#allocation2 + $0xb8] sm:$0xf]
    %v148 = vld [vmem:[#allocation2 + $0xbc] sm:$0xf]
    %v149 = vld [vmem:[#allocation2 + $0xc0] sm:$0xf]
    %v150 = vld [vmem:[#allocation2 + $0xc4] sm:$0xf]
    %v151 = vld [vmem:[#allocation2 + $0xc8] sm:$0xf]
    %v152 = vld [vmem:[#allocation2 + $0xcc] sm:$0xf]
    %v153 = vld [vmem:[#allocation2 + $0xd0] sm:$0xf]
    %v154 = vld [vmem:[#allocation2 + $0xd4] sm:$0xf]
    %v155 = vld [vmem:[#allocation2 + $0xd8] sm:$0xf]
    %v156 = vld [vmem:[#allocation2 + $0xdc] sm:$0xf]
    %v157 = vld [vmem:[#allocation2 + $0xe0] sm:$0xf]
    %v158 = vld [vmem:[#allocation2 + $0xe4] sm:$0xf]
    %v159 = vld [vmem:[#allocation2 + $0xe8] sm:$0xf]
    %v160 = vld [vmem:[#allocation2 + $0xec] sm:$0xf]
    %v161 = vld [vmem:[#allocation2 + $0xf0] sm:$0xf]
    %v162 = vld [vmem:[#allocation2 + $0xf4] sm:$0xf]
    %v163 = vld [vmem:[#allocation2 + $0xf8] sm:$0xf]
    %v164 = vld [vmem:[#allocation2 + $0xfc] sm:$0xf]
    %v165 = vld [vmem:[#allocation2 + $0x100] sm:$0xf]
    %v166 = vld [vmem:[#allocation2 + $0x104] sm:$0xf]
    %v167 = vld [vmem:[#allocation2 + $0x108] sm:$0xf]
    %v168 = vld [vmem:[#allocation2 + $0x10c] sm:$0xf]
    %v169 = vld [vmem:[#allocation2 + $0x110] sm:$0xf]
    %v170 = vld [vmem:[#allocation2 + $0x114] sm:$0xf]
    %v171 = vld [vmem:[#allocation2 + $0x118] sm:$0xf]
    %v172 = vld [vmem:[#allocation2 + $0x11c] sm:$0xf]
    %v173 = vld [vmem:[#allocation2 + $0x120] sm:$0xf]
    %v174 = vld [vmem:[#allocation2 + $0x124] sm:$0xf]
    %v175 = vld [vmem:[#allocation2 + $0x128] sm:$0xf]
    %v176 = vld [vmem:[#allocation2 + $0x12c] sm:$0xf]
    %v177 = vld [vmem:[#allocation2 + $0x130] sm:$0xf]
    %v178 = vld [vmem:[#allocation2 + $0x134] sm:$0xf]
    %v179 = vld [vmem:[#allocation2 + $0x138] sm:$0xf]
    %v180 = vld [vmem:[#allocation2 + $0x13c] sm:$0xf]
    %v181 = vld [vmem:[#allocation2 + $0x140] sm:$0xf]
    %v182 = vld [vmem:[#allocation2 + $0x144] sm:$0xf]
    %v183 = vld [vmem:[#allocation2 + $0x148] sm:$0xf]
    %v184 = vld [vmem:[#allocation2 + $0x14c] sm:$0xf]
    %v185 = vld [vmem:[#allocation2 + $0x150] sm:$0xf]
    %v186 = vld [vmem:[#allocation2 + $0x154] sm:$0xf]
    %v187 = vld [vmem:[#allocation2 + $0x158] sm:$0xf]
    %v188 = vld [vmem:[#allocation2 + $0x15c] sm:$0xf]
    %v189 = vld [vmem:[#allocation2 + $0x160] sm:$0xf]
    %v190 = vld [vmem:[#allocation2 + $0x164] sm:$0xf]
    %v191 = vld [vmem:[#allocation2 + $0x168] sm:$0xf]
    %v192 = vld [vmem:[#allocation2 + $0x16c] sm:$0xf]
    %v193 = vld [vmem:[#allocation2 + $0x170] sm:$0xf]
    %v194 = vld [vmem:[#allocation2 + $0x174] sm:$0xf]
    %v195 = vld [vmem:[#allocation2 + $0x178] sm:$0xf]
    %v196 = vld [vmem:[#allocation2 + $0x17c] sm:$0xf]
    %v197 = vld [vmem:[#allocation2 + $0x180] sm:$0xf]
    %v198 = vld [vmem:[#allocation2 + $0x184] sm:$0xf]
    %v199 = vld [vmem:[#allocation2 + $0x188] sm:$0xf]
    %v200 = vld [vmem:[#allocation2 + $0x18c] sm:$0xf]
    %v201 = vld [vmem:[#allocation2 + $0x190] sm:$0xf]
    %v202 = vld [vmem:[#allocation2 + $0x194] sm:$0xf]
    %v203 = vld [vmem:[#allocation2 + $0x198] sm:$0xf]
    %v204 = vld [vmem:[#allocation2 + $0x19c] sm:$0xf]
    %v205 = vld [vmem:[#allocation2 + $0x1a0] sm:$0xf]
    %v206 = vld [vmem:[#allocation2 + $0x1a4] sm:$0xf]
    %v207 = vld [vmem:[#allocation2 + $0x1a8] sm:$0xf]
    %v208 = vld [vmem:[#allocation2 + $0x1ac] sm:$0xf]
    %v209 = vld [vmem:[#allocation2 + $0x1b0] sm:$0xf]
    %v210 = vld [vmem:[#allocation2 + $0x1b4] sm:$0xf]
    %v211 = vld [vmem:[#allocation2 + $0x1b8] sm:$0xf]
    %v212 = vld [vmem:[#allocation2 + $0x1bc] sm:$0xf]
    %v213 = vld [vmem:[#allocation2 + $0x1c0] sm:$0xf]
    %v214 = vld [vmem:[#allocation2 + $0x1c4] sm:$0xf]
    %v215 = vld [vmem:[#allocation2 + $0x1c8] sm:$0xf]
    %v216 = vld [vmem:[#allocation2 + $0x1cc] sm:$0xf]
    %v217 = vld [vmem:[#allocation2 + $0x1d0] sm:$0xf]
    %v218 = vld [vmem:[#allocation2 + $0x1d4] sm:$0xf]
    %v219 = vld [vmem:[#allocation2 + $0x1d8] sm:$0xf]
    %v220 = vld [vmem:[#allocation2 + $0x1dc] sm:$0xf]
    %v221 = vld [vmem:[#allocation2 + $0x1e0] sm:$0xf]
    %v222 = vld [vmem:[#allocation2 + $0x1e4] sm:$0xf]
    %v223 = vld [vmem:[#allocation2 + $0x1e8] sm:$0xf]
    %v224 = vld [vmem:[#allocation2 + $0x1ec] sm:$0xf]
    %v225 = vld [vmem:[#allocation2 + $0x1f0] sm:$0xf]
    %v226 = vld [vmem:[#allocation2 + $0x1f4] sm:$0xf]
    %v227 = vld [vmem:[#allocation2 + $0x1f8] sm:$0xf]
    %v228 = vld [vmem:[#allocation2 + $0x1fc] sm:$0xf]
    %v229 = vld [vmem:[#allocation2 + $0x200] sm:$0xf]
    %v230 = vld [vmem:[#allocation2 + $0x204] sm:$0xf]
    %v231 = vld [vmem:[#allocation2 + $0x208] sm:$0xf]
    %v232 = vld [vmem:[#allocation2 + $0x20c] sm:$0xf]
    %v233 = vld [vmem:[#allocation2 + $0x210] sm:$0xf]
    %v234 = vld [vmem:[#allocation2 + $0x214] sm:$0xf]
    %v235 = vld [vmem:[#allocation2 + $0x218] sm:$0xf]
    %v236 = vld [vmem:[#allocation2 + $0x21c] sm:$0xf]
    %v237 = vld [vmem:[#allocation2 + $0x220] sm:$0xf]
    %v238 = vld [vmem:[#allocation2 + $0x224] sm:$0xf]
    %v239 = vld [vmem:[#allocation2 + $0x228] sm:$0xf]
    %v240 = vld [vmem:[#allocation2 + $0x22c] sm:$0xf]
    %v241 = vld [vmem:[#allocation2 + $0x230] sm:$0xf]
    %v242 = vld [vmem:[#allocation2 + $0x234] sm:$0xf]
    %v243 = vld [vmem:[#allocation2 + $0x238] sm:$0xf]
    %v244 = vld [vmem:[#allocation2 + $0x23c] sm:$0xf]
    %v245 = vld [vmem:[#allocation2 + $0x240] sm:$0xf]
    %v246 = vld [vmem:[#allocation2 + $0x244] sm:$0xf]
    %v247 = vld [vmem:[#allocation2 + $0x248] sm:$0xf]
    %v248 = vld [vmem:[#allocation2 + $0x24c] sm:$0xf]
    %v249 = vld [vmem:[#allocation2 + $0x250] sm:$0xf]
    %v250 = vld [vmem:[#allocation2 + $0x254] sm:$0xf]
    %v251 = vld [vmem:[#allocation2 + $0x258] sm:$0xf]
    %v252 = vld [vmem:[#allocation2 + $0x25c] sm:$0xf]
    %v253 = vld [vmem:[#allocation2 + $0x260] sm:$0xf]
    %v254 = vld [vmem:[#allocation2 + $0x264] sm:$0xf]
    %v255 = vld [vmem:[#allocation2 + $0x268] sm:$0xf]
    %v256 = vld [vmem:[#allocation2 + $0x26c] sm:$0xf]
    %v257 = vld [vmem:[#allocation2 + $0x270] sm:$0xf]
    %v258 = vld [vmem:[#allocation2 + $0x274] sm:$0xf]
    %v259 = vld [vmem:[#allocation2 + $0x278] sm:$0xf]
    %v260 = vld [vmem:[#allocation2 + $0x27c] sm:$0xf]
    %v261 = vld [vmem:[#allocation2 + $0x280] sm:$0xf]
    %v262 = vld [vmem:[#allocation2 + $0x284] sm:$0xf]
    %v263 = vld [vmem:[#allocation2 + $0x288] sm:$0xf]
    %v264 = vld [vmem:[#allocation2 + $0x28c] sm:$0xf]
    %v265 = vld [vmem:[#allocation2 + $0x290] sm:$0xf]
    %v266 = vld [vmem:[#allocation2 + $0x294] sm:$0xf]
    %v267 = vld [vmem:[#allocation2 + $0x298] sm:$0xf]
    %v268 = vld [vmem:[#allocation2 + $0x29c] sm:$0xf]
    %v269 = vld [vmem:[#allocation2 + $0x2a0] sm:$0xf]
    %v270 = vld [vmem:[#allocation2 + $0x2a4] sm:$0xf]
    %v271 = vld [vmem:[#allocation2 + $0x2a8] sm:$0xf]
    %v272 = vld [vmem:[#allocation2 + $0x2ac] sm:$0xf]
    %v273 = vld [vmem:[#allocation2 + $0x2b0] sm:$0xf]
    %v274 = vld [vmem:[#allocation2 + $0x2b4] sm:$0xf]
    %v275 = vld [vmem:[#allocation2 + $0x2b8] sm:$0xf]
    %v276 = vld [vmem:[#allocation2 + $0x2bc] sm:$0xf]
    %v277 = vld [vmem:[#allocation2 + $0x2c0] sm:$0xf]
    %v278 = vld [vmem:[#allocation2 + $0x2c4] sm:$0xf]
    %v279 = vld [vmem:[#allocation2 + $0x2c8] sm:$0xf]
    %v280 = vld [vmem:[#allocation2 + $0x2cc] sm:$0xf]
    %v281 = vld [vmem:[#allocation2 + $0x2d0] sm:$0xf]
    %v282 = vld [vmem:[#allocation2 + $0x2d4] sm:$0xf]
    %v283 = vld [vmem:[#allocation2 + $0x2d8] sm:$0xf]
    %v284 = vld [vmem:[#allocation2 + $0x2dc] sm:$0xf]
    %v285 = vld [vmem:[#allocation2 + $0x2e0] sm:$0xf]
    %v286 = vld [vmem:[#allocation2 + $0x2e4] sm:$0xf]
    %v287 = vld [vmem:[#allocation2 + $0x2e8] sm:$0xf]
    %v288 = vld [vmem:[#allocation2 + $0x2ec] sm:$0xf]
    %v289 = vld [vmem:[#allocation2 + $0x2f0] sm:$0xf]
    %v290 = vld [vmem:[#allocation2 + $0x2f4] sm:$0xf]
    %v291 = vld [vmem:[#allocation2 + $0x2f8] sm:$0xf]
    %v292 = vld [vmem:[#allocation2 + $0x2fc] sm:$0xf]
    %v293 = vld [vmem:[#allocation2 + $0x300] sm:$0xf]
    %v294 = vld [vmem:[#allocation2 + $0x304] sm:$0xf]
    %v295 = vld [vmem:[#allocation2 + $0x308] sm:$0xf]
    %v296 = vld [vmem:[#allocation2 + $0x30c] sm:$0xf]
    %v297 = vld [vmem:[#allocation2 + $0x310] sm:$0xf]
    %v298 = vld [vmem:[#allocation2 + $0x314] sm:$0xf]
    %v299 = vld [vmem:[#allocation2 + $0x318] sm:$0xf]
    %v300 = vld [vmem:[#allocation2 + $0x31c] sm:$0xf]
    %v301 = vld [vmem:[#allocation2 + $0x320] sm:$0xf]
    %v302 = vld [vmem:[#allocation2 + $0x324] sm:$0xf]
    %v303 = vld [vmem:[#allocation2 + $0x328] sm:$0xf]
    %v304 = vld [vmem:[#allocation2 + $0x32c] sm:$0xf]
    %v305 = vld [vmem:[#allocation2 + $0x330] sm:$0xf]
    %v306 = vld [vmem:[#allocation2 + $0x334] sm:$0xf]
    %v307 = vld [vmem:[#allocation2 + $0x338] sm:$0xf]
    %v308 = vld [vmem:[#allocation2 + $0x33c] sm:$0xf]
    %v309 = vld [vmem:[#allocation2 + $0x340] sm:$0xf]
    %v310 = vld [vmem:[#allocation2 + $0x344] sm:$0xf]
    %v311 = vld [vmem:[#allocation2 + $0x348] sm:$0xf]
    %v312 = vld [vmem:[#allocation2 + $0x34c] sm:$0xf]
    %v313 = vld [vmem:[#allocation2 + $0x350] sm:$0xf]
    %v314 = vld [vmem:[#allocation2 + $0x354] sm:$0xf]
    %v315 = vld [vmem:[#allocation2 + $0x358] sm:$0xf]
    %v316 = vld [vmem:[#allocation2 + $0x35c] sm:$0xf]
    %v317 = vld [vmem:[#allocation2 + $0x360] sm:$0xf]
    %v318 = vld [vmem:[#allocation2 + $0x364] sm:$0xf]
    %v319 = vld [vmem:[#allocation2 + $0x368] sm:$0xf]
    %v320 = vld [vmem:[#allocation2 + $0x36c] sm:$0xf]
    %v321 = vld [vmem:[#allocation2 + $0x370] sm:$0xf]
    %v322 = vld [vmem:[#allocation2 + $0x374] sm:$0xf]
    %v323 = vld [vmem:[#allocation2 + $0x378] sm:$0xf]
    %v324 = vld [vmem:[#allocation2 + $0x37c] sm:$0xf]
    %v325 = vld [vmem:[#allocation2 + $0x380] sm:$0xf]
    %v326 = vld [vmem:[#allocation2 + $0x384] sm:$0xf]
    %v327 = vld [vmem:[#allocation2 + $0x388] sm:$0xf]
    %v328 = vld [vmem:[#allocation2 + $0x38c] sm:$0xf]
    %v329 = vld [vmem:[#allocation2 + $0x390] sm:$0xf]
    %v330 = vld [vmem:[#allocation2 + $0x394] sm:$0xf]
    %v331 = vld [vmem:[#allocation2 + $0x398] sm:$0xf]
    %v332 = vld [vmem:[#allocation2 + $0x39c] sm:$0xf]
    %v333 = vld [vmem:[#allocation2 + $0x3a0] sm:$0xf]
    %v334 = vld [vmem:[#allocation2 + $0x3a4] sm:$0xf]
    %v335 = vld [vmem:[#allocation2 + $0x3a8] sm:$0xf]
    %v336 = vld [vmem:[#allocation2 + $0x3ac] sm:$0xf]
    %v337 = vld [vmem:[#allocation2 + $0x3b0] sm:$0xf]
    %v338 = vld [vmem:[#allocation2 + $0x3b4] sm:$0xf]
    %v339 = vld [vmem:[#allocation2 + $0x3b8] sm:$0xf]
    %v340 = vld [vmem:[#allocation2 + $0x3bc] sm:$0xf]
    %v341 = vld [vmem:[#allocation2 + $0x3c0] sm:$0xf]
    %v342 = vld [vmem:[#allocation2 + $0x3c4] sm:$0xf]
    %v343 = vld [vmem:[#allocation2 + $0x3c8] sm:$0xf]
    %v344 = vld [vmem:[#allocation2 + $0x3cc] sm:$0xf]
    %v345 = vld [vmem:[#allocation2 + $0x3d0] sm:$0xf]
    %v346 = vld [vmem:[#allocation2 + $0x3d4] sm:$0xf]
    %v347 = vld [vmem:[#allocation2 + $0x3d8] sm:$0xf]
    %v348 = vld [vmem:[#allocation2 + $0x3dc] sm:$0xf]
    %v349 = vld [vmem:[#allocation2 + $0x3e0] sm:$0xf]
    %v350 = vld [vmem:[#allocation2 + $0x3e4] sm:$0xf]
    %v351 = vld [vmem:[#allocation2 + $0x3e8] sm:$0xf]
    %v352 = vld [vmem:[#allocation2 + $0x3ec] sm:$0xf]
    %v353 = vld [vmem:[#allocation2 + $0x3f0] sm:$0xf]
    %v354 = vld [vmem:[#allocation2 + $0x3f4] sm:$0xf]
    %v355 = vld [vmem:[#allocation2 + $0x3f8] sm:$0xf]
    %v356 = vld [vmem:[#allocation2 + $0x3fc] sm:$0xf]
    %v357 = vld [vmem:[#allocation2 + $0x400] sm:$0xf]
    %v358 = vld [vmem:[#allocation2 + $0x404] sm:$0xf]
    %v359 = vld [vmem:[#allocation2 + $0x408] sm:$0xf]
    %v360 = vld [vmem:[#allocation2 + $0x40c] sm:$0xf]
    %v361 = vld [vmem:[#allocation2 + $0x410] sm:$0xf]
    %v362 = vld [vmem:[#allocation2 + $0x414] sm:$0xf]
    %v363 = vld [vmem:[#allocation2 + $0x418] sm:$0xf]
    %v364 = vld [vmem:[#allocation2 + $0x41c] sm:$0xf]
    %v365 = vld [vmem:[#allocation2 + $0x420] sm:$0xf]
    %v366 = vld [vmem:[#allocation2 + $0x424] sm:$0xf]
    %v367 = vld [vmem:[#allocation2 + $0x428] sm:$0xf]
    %v368 = vld [vmem:[#allocation2 + $0x42c] sm:$0xf]
    %v369 = vld [vmem:[#allocation2 + $0x430] sm:$0xf]
    %v370 = vld [vmem:[#allocation2 + $0x434] sm:$0xf]
    %v371 = vld [vmem:[#allocation2 + $0x438] sm:$0xf]
    %v372 = vld [vmem:[#allocation2 + $0x43c] sm:$0xf]
    %v373 = vld [vmem:[#allocation2 + $0x440] sm:$0xf]
    %v374 = vld [vmem:[#allocation2 + $0x444] sm:$0xf]
    %v375 = vld [vmem:[#allocation2 + $0x448] sm:$0xf]
    %v376 = vld [vmem:[#allocation2 + $0x44c] sm:$0xf]
    %v377 = vld [vmem:[#allocation2 + $0x450] sm:$0xf]
    %v378 = vld [vmem:[#allocation2 + $0x454] sm:$0xf]
    %v379 = vld [vmem:[#allocation2 + $0x458] sm:$0xf]
    %v380 = vld [vmem:[#allocation2 + $0x45c] sm:$0xf]
    %v381 = vld [vmem:[#allocation2 + $0x460] sm:$0xf]
    %v382 = vld [vmem:[#allocation2 + $0x464] sm:$0xf]
    %v383 = vld [vmem:[#allocation2 + $0x468] sm:$0xf]
    %v384 = vld [vmem:[#allocation2 + $0x46c] sm:$0xf]
    %v385 = vld [vmem:[#allocation2 + $0x470] sm:$0xf]
    %v386 = vld [vmem:[#allocation2 + $0x474] sm:$0xf]
    %v387 = vld [vmem:[#allocation2 + $0x478] sm:$0xf]
    %v388 = vld [vmem:[#allocation2 + $0x47c] sm:$0xf]
    %v389 = vld [vmem:[#allocation2 + $0x480] sm:$0xf]
    %v390 = vld [vmem:[#allocation2 + $0x484] sm:$0xf]
    %v391 = vld [vmem:[#allocation2 + $0x488] sm:$0xf]
    %v392 = vld [vmem:[#allocation2 + $0x48c] sm:$0xf]
    %v393 = vld [vmem:[#allocation2 + $0x490] sm:$0xf]
    %v394 = vld [vmem:[#allocation2 + $0x494] sm:$0xf]
    %v395 = vld [vmem:[#allocation2 + $0x498] sm:$0xf]
    %v396 = vld [vmem:[#allocation2 + $0x49c] sm:$0xf]
    %v397 = vld [vmem:[#allocation2 + $0x4a0] sm:$0xf]
    %v398 = vld [vmem:[#allocation2 + $0x4a4] sm:$0xf]
    %v399 = vld [vmem:[#allocation2 + $0x4a8] sm:$0xf]
    %v400 = vld [vmem:[#allocation2 + $0x4ac] sm:$0xf]
    %v401 = vld [vmem:[#allocation2 + $0x4b0] sm:$0xf]
    %v402 = vld [vmem:[#allocation2 + $0x4b4] sm:$0xf]
    %v403 = vld [vmem:[#allocation2 + $0x4b8] sm:$0xf]
    %v404 = vld [vmem:[#allocation2 + $0x4bc] sm:$0xf]
    %v405 = vld [vmem:[#allocation2 + $0x4c0] sm:$0xf]
    %v406 = vld [vmem:[#allocation2 + $0x4c4] sm:$0xf]
    %v407 = vld [vmem:[#allocation2 + $0x4c8] sm:$0xf]
    %v408 = vld [vmem:[#allocation2 + $0x4cc] sm:$0xf]
    %v409 = vld [vmem:[#allocation2 + $0x4d0] sm:$0xf]
    %v410 = vld [vmem:[#allocation2 + $0x4d4] sm:$0xf]
    %v411 = vld [vmem:[#allocation2 + $0x4d8] sm:$0xf]
    %v412 = vld [vmem:[#allocation2 + $0x4dc] sm:$0xf]
    %v413 = vld [vmem:[#allocation2 + $0x4e0] sm:$0x3]
    %v414 = vld [vmem:[%s2] sm:$0x1]
    %v416 = vlaneseq
    %v417 = vshrl.u32 %v416, 7
    %v418 = vsub.s32 0, %v417
    %v419 = vrot.slane %v414, %v418
    %v734 = vunpack.c.l.b16 %v101
    %v735 = vunpack.c.l.b16 %v102
    %v736 = vunpack.c.l.b16 %v103
    %v737 = vunpack.c.l.b16 %v104
    %v738 = vunpack.c.l.b16 %v105
    %v739 = vunpack.c.l.b16 %v106
    %v740 = vunpack.c.l.b16 %v107
    %v741 = vunpack.c.l.b16 %v108
    %v742 = vunpack.c.l.b16 %v109
    %v743 = vunpack.c.l.b16 %v110
    %v744 = vunpack.c.l.b16 %v111
    %v745 = vunpack.c.l.b16 %v112
    %v746 = vunpack.c.l.b16 %v113
    %v747 = vunpack.c.l.b16 %v114
    %v748 = vunpack.c.l.b16 %v115
    %v749 = vunpack.c.l.b16 %v116
    %v750 = vunpack.c.l.b16 %v117
    %v751 = vunpack.c.l.b16 %v118
    %v752 = vunpack.c.l.b16 %v119
    %v753 = vunpack.c.l.b16 %v120
    %v754 = vunpack.c.l.b16 %v121
    %v755 = vunpack.c.l.b16 %v122
    %v756 = vunpack.c.l.b16 %v123
    %v757 = vunpack.c.l.b16 %v124
    %v758 = vunpack.c.l.b16 %v125
    %v759 = vunpack.c.l.b16 %v126
    %v760 = vunpack.c.l.b16 %v127
    %v761 = vunpack.c.l.b16 %v128
    %v762 = vunpack.c.l.b16 %v129
    %v763 = vunpack.c.l.b16 %v130
    %v764 = vunpack.c.l.b16 %v131
    %v765 = vunpack.c.l.b16 %v132
    %v766 = vunpack.c.l.b16 %v133
    %v767 = vunpack.c.l.b16 %v134
    %v768 = vunpack.c.l.b16 %v135
    %v769 = vunpack.c.l.b16 %v136
    %v770 = vunpack.c.l.b16 %v137
    %v771 = vunpack.c.l.b16 %v138
    %v772 = vunpack.c.l.b16 %v139
    %v773 = vunpack.c.l.b16 %v140
    %v774 = vunpack.c.l.b16 %v141
    %v775 = vunpack.c.l.b16 %v142
    %v776 = vunpack.c.l.b16 %v143
    %v777 = vunpack.c.l.b16 %v144
    %v778 = vunpack.c.l.b16 %v145
    %v779 = vunpack.c.l.b16 %v146
    %v780 = vunpack.c.l.b16 %v147
    %v781 = vunpack.c.l.b16 %v148
    %v782 = vunpack.c.l.b16 %v149
    %v783 = vunpack.c.l.b16 %v150
    %v784 = vunpack.c.l.b16 %v151
    %v785 = vunpack.c.l.b16 %v152
    %v786 = vunpack.c.l.b16 %v153
    %v787 = vunpack.c.l.b16 %v154
    %v788 = vunpack.c.l.b16 %v155
    %v789 = vunpack.c.l.b16 %v156
    %v790 = vunpack.c.l.b16 %v157
    %v791 = vunpack.c.l.b16 %v158
    %v792 = vunpack.c.l.b16 %v159
    %v793 = vunpack.c.l.b16 %v160
    %v794 = vunpack.c.l.b16 %v161
    %v795 = vunpack.c.l.b16 %v162
    %v796 = vunpack.c.l.b16 %v163
    %v797 = vunpack.c.l.b16 %v164
    %v798 = vunpack.c.l.b16 %v165
    %v799 = vunpack.c.l.b16 %v166
    %v800 = vunpack.c.l.b16 %v167
    %v801 = vunpack.c.l.b16 %v168
    %v802 = vunpack.c.l.b16 %v169
    %v803 = vunpack.c.l.b16 %v170
    %v804 = vunpack.c.l.b16 %v171
    %v805 = vunpack.c.l.b16 %v172
    %v806 = vunpack.c.l.b16 %v173
    %v807 = vunpack.c.l.b16 %v174
    %v808 = vunpack.c.l.b16 %v175
    %v809 = vunpack.c.l.b16 %v176
    %v810 = vunpack.c.l.b16 %v177
    %v811 = vunpack.c.l.b16 %v178
    %v812 = vunpack.c.l.b16 %v179
    %v813 = vunpack.c.l.b16 %v180
    %v814 = vunpack.c.l.b16 %v181
    %v815 = vunpack.c.l.b16 %v182
    %v816 = vunpack.c.l.b16 %v183
    %v817 = vunpack.c.l.b16 %v184
    %v818 = vunpack.c.l.b16 %v185
    %v819 = vunpack.c.l.b16 %v186
    %v820 = vunpack.c.l.b16 %v187
    %v821 = vunpack.c.l.b16 %v188
    %v822 = vunpack.c.l.b16 %v189
    %v823 = vunpack.c.l.b16 %v190
    %v824 = vunpack.c.l.b16 %v191
    %v825 = vunpack.c.l.b16 %v192
    %v826 = vunpack.c.l.b16 %v193
    %v827 = vunpack.c.l.b16 %v194
    %v828 = vunpack.c.l.b16 %v195
    %v829 = vunpack.c.l.b16 %v196
    %v830 = vunpack.c.l.b16 %v197
    %v831 = vunpack.c.l.b16 %v198
    %v832 = vunpack.c.l.b16 %v199
    %v833 = vunpack.c.l.b16 %v200
    %v834 = vunpack.c.l.b16 %v201
    %v835 = vunpack.c.l.b16 %v202
    %v836 = vunpack.c.l.b16 %v203
    %v837 = vunpack.c.l.b16 %v204
    %v838 = vunpack.c.l.b16 %v205
    %v839 = vunpack.c.l.b16 %v206
    %v840 = vunpack.c.l.b16 %v207
    %v841 = vunpack.c.l.b16 %v208
    %v842 = vunpack.c.l.b16 %v209
    %v843 = vunpack.c.l.b16 %v210
    %v844 = vunpack.c.l.b16 %v211
    %v845 = vunpack.c.l.b16 %v212
    %v846 = vunpack.c.l.b16 %v213
    %v847 = vunpack.c.l.b16 %v214
    %v848 = vunpack.c.l.b16 %v215
    %v849 = vunpack.c.l.b16 %v216
    %v850 = vunpack.c.l.b16 %v217
    %v851 = vunpack.c.l.b16 %v218
    %v852 = vunpack.c.l.b16 %v219
    %v853 = vunpack.c.l.b16 %v220
    %v854 = vunpack.c.l.b16 %v221
    %v855 = vunpack.c.l.b16 %v222
    %v856 = vunpack.c.l.b16 %v223
    %v857 = vunpack.c.l.b16 %v224
    %v858 = vunpack.c.l.b16 %v225
    %v859 = vunpack.c.l.b16 %v226
    %v860 = vunpack.c.l.b16 %v227
    %v861 = vunpack.c.l.b16 %v228
    %v862 = vunpack.c.l.b16 %v229
    %v863 = vunpack.c.l.b16 %v230
    %v864 = vunpack.c.l.b16 %v231
    %v865 = vunpack.c.l.b16 %v232
    %v866 = vunpack.c.l.b16 %v233
    %v867 = vunpack.c.l.b16 %v234
    %v868 = vunpack.c.l.b16 %v235
    %v869 = vunpack.c.l.b16 %v236
    %v870 = vunpack.c.l.b16 %v237
    %v871 = vunpack.c.l.b16 %v238
    %v872 = vunpack.c.l.b16 %v239
    %v873 = vunpack.c.l.b16 %v240
    %v874 = vunpack.c.l.b16 %v241
    %v875 = vunpack.c.l.b16 %v242
    %v876 = vunpack.c.l.b16 %v243
    %v877 = vunpack.c.l.b16 %v244
    %v878 = vunpack.c.l.b16 %v245
    %v879 = vunpack.c.l.b16 %v246
    %v880 = vunpack.c.l.b16 %v247
    %v881 = vunpack.c.l.b16 %v248
    %v882 = vunpack.c.l.b16 %v249
    %v883 = vunpack.c.l.b16 %v250
    %v884 = vunpack.c.l.b16 %v251
    %v885 = vunpack.c.l.b16 %v252
    %v886 = vunpack.c.l.b16 %v253
    %v887 = vunpack.c.l.b16 %v254
    %v888 = vunpack.c.l.b16 %v255
    %v889 = vunpack.c.l.b16 %v256
    %v890 = vunpack.c.l.b16 %v257
    %v891 = vunpack.c.l.b16 %v258
    %v892 = vunpack.c.l.b16 %v259
    %v893 = vunpack.c.l.b16 %v260
    %v894 = vunpack.c.l.b16 %v261
    %v895 = vunpack.c.l.b16 %v262
    %v896 = vunpack.c.l.b16 %v263
    %v897 = vunpack.c.l.b16 %v264
    %v898 = vunpack.c.l.b16 %v265
    %v899 = vunpack.c.l.b16 %v266
    %v900 = vunpack.c.l.b16 %v267
    %v901 = vunpack.c.l.b16 %v268
    %v902 = vunpack.c.l.b16 %v269
    %v903 = vunpack.c.l.b16 %v270
    %v904 = vunpack.c.l.b16 %v271
    %v905 = vunpack.c.l.b16 %v272
    %v906 = vunpack.c.l.b16 %v273
    %v907 = vunpack.c.l.b16 %v274
    %v908 = vunpack.c.l.b16 %v275
    %v909 = vunpack.c.l.b16 %v276
    %v910 = vunpack.c.l.b16 %v277
    %v911 = vunpack.c.l.b16 %v278
    %v912 = vunpack.c.l.b16 %v279
    %v913 = vunpack.c.l.b16 %v280
    %v914 = vunpack.c.l.b16 %v281
    %v915 = vunpack.c.l.b16 %v282
    %v916 = vunpack.c.l.b16 %v283
    %v917 = vunpack.c.l.b16 %v284
    %v918 = vunpack.c.l.b16 %v285
    %v919 = vunpack.c.l.b16 %v286
    %v920 = vunpack.c.l.b16 %v287
    %v921 = vunpack.c.l.b16 %v288
    %v922 = vunpack.c.l.b16 %v289
    %v923 = vunpack.c.l.b16 %v290
    %v924 = vunpack.c.l.b16 %v291
    %v925 = vunpack.c.l.b16 %v292
    %v926 = vunpack.c.l.b16 %v293
    %v927 = vunpack.c.l.b16 %v294
    %v928 = vunpack.c.l.b16 %v295
    %v929 = vunpack.c.l.b16 %v296
    %v930 = vunpack.c.l.b16 %v297
    %v931 = vunpack.c.l.b16 %v298
    %v932 = vunpack.c.l.b16 %v299
    %v933 = vunpack.c.l.b16 %v300
    %v934 = vunpack.c.l.b16 %v301
    %v935 = vunpack.c.l.b16 %v302
    %v936 = vunpack.c.l.b16 %v303
    %v937 = vunpack.c.l.b16 %v304
    %v938 = vunpack.c.l.b16 %v305
    %v939 = vunpack.c.l.b16 %v306
    %v940 = vunpack.c.l.b16 %v307
    %v941 = vunpack.c.l.b16 %v308
    %v942 = vunpack.c.l.b16 %v309
    %v943 = vunpack.c.l.b16 %v310
    %v944 = vunpack.c.l.b16 %v311
    %v945 = vunpack.c.l.b16 %v312
    %v946 = vunpack.c.l.b16 %v313
    %v947 = vunpack.c.l.b16 %v314
    %v948 = vunpack.c.l.b16 %v315
    %v949 = vunpack.c.l.b16 %v316
    %v950 = vunpack.c.l.b16 %v317
    %v951 = vunpack.c.l.b16 %v318
    %v952 = vunpack.c.l.b16 %v319
    %v953 = vunpack.c.l.b16 %v320
    %v954 = vunpack.c.l.b16 %v321
    %v955 = vunpack.c.l.b16 %v322
    %v956 = vunpack.c.l.b16 %v323
    %v957 = vunpack.c.l.b16 %v324
    %v958 = vunpack.c.l.b16 %v325
    %v959 = vunpack.c.l.b16 %v326
    %v960 = vunpack.c.l.b16 %v327
    %v961 = vunpack.c.l.b16 %v328
    %v962 = vunpack.c.l.b16 %v329
    %v963 = vunpack.c.l.b16 %v330
    %v964 = vunpack.c.l.b16 %v331
    %v965 = vunpack.c.l.b16 %v332
    %v966 = vunpack.c.l.b16 %v333
    %v967 = vunpack.c.l.b16 %v334
    %v968 = vunpack.c.l.b16 %v335
    %v969 = vunpack.c.l.b16 %v336
    %v970 = vunpack.c.l.b16 %v337
    %v971 = vunpack.c.l.b16 %v338
    %v972 = vunpack.c.l.b16 %v339
    %v973 = vunpack.c.l.b16 %v340
    %v974 = vunpack.c.l.b16 %v341
    %v975 = vunpack.c.l.b16 %v342
    %v976 = vunpack.c.l.b16 %v343
    %v977 = vunpack.c.l.b16 %v344
    %v978 = vunpack.c.l.b16 %v345
    %v979 = vunpack.c.l.b16 %v346
    %v980 = vunpack.c.l.b16 %v347
    %v981 = vunpack.c.l.b16 %v348
    %v982 = vunpack.c.l.b16 %v349
    %v983 = vunpack.c.l.b16 %v350
    %v984 = vunpack.c.l.b16 %v351
    %v985 = vunpack.c.l.b16 %v352
    %v986 = vunpack.c.l.b16 %v353
    %v987 = vunpack.c.l.b16 %v354
    %v988 = vunpack.c.l.b16 %v355
    %v989 = vunpack.c.l.b16 %v356
    %v990 = vunpack.c.l.b16 %v357
    %v991 = vunpack.c.l.b16 %v358
    %v992 = vunpack.c.l.b16 %v359
    %v993 = vunpack.c.l.b16 %v360
    %v994 = vunpack.c.l.b16 %v361
    %v995 = vunpack.c.l.b16 %v362
    %v996 = vunpack.c.l.b16 %v363
    %v997 = vunpack.c.l.b16 %v364
    %v998 = vunpack.c.l.b16 %v365
    %v999 = vunpack.c.l.b16 %v366
    %v1000 = vunpack.c.l.b16 %v367
    %v1001 = vunpack.c.l.b16 %v368
    %v1002 = vunpack.c.l.b16 %v369
    %v1003 = vunpack.c.l.b16 %v370
    %v1004 = vunpack.c.l.b16 %v371
    %v1005 = vunpack.c.l.b16 %v372
    %v1006 = vunpack.c.l.b16 %v373
    %v1007 = vunpack.c.l.b16 %v374
    %v1008 = vunpack.c.l.b16 %v375
    %v1009 = vunpack.c.l.b16 %v376
    %v1010 = vunpack.c.l.b16 %v377
    %v1011 = vunpack.c.l.b16 %v378
    %v1012 = vunpack.c.l.b16 %v379
    %v1013 = vunpack.c.l.b16 %v380
    %v1014 = vunpack.c.l.b16 %v381
    %v1015 = vunpack.c.l.b16 %v382
    %v1016 = vunpack.c.l.b16 %v383
    %v1017 = vunpack.c.l.b16 %v384
    %v1018 = vunpack.c.l.b16 %v385
    %v1019 = vunpack.c.l.b16 %v386
    %v1020 = vunpack.c.l.b16 %v387
    %v1021 = vunpack.c.l.b16 %v388
    %v1022 = vunpack.c.l.b16 %v389
    %v1023 = vunpack.c.l.b16 %v390
    %v1024 = vunpack.c.l.b16 %v391
    %v1025 = vunpack.c.l.b16 %v392
    %v1026 = vunpack.c.l.b16 %v393
    %v1027 = vunpack.c.l.b16 %v394
    %v1028 = vunpack.c.l.b16 %v395
    %v1029 = vunpack.c.l.b16 %v396
    %v1030 = vunpack.c.l.b16 %v397
    %v1031 = vunpack.c.l.b16 %v398
    %v1032 = vunpack.c.l.b16 %v399
    %v1033 = vunpack.c.l.b16 %v400
    %v1034 = vunpack.c.l.b16 %v401
    %v1035 = vunpack.c.l.b16 %v402
    %v1036 = vunpack.c.l.b16 %v403
    %v1037 = vunpack.c.l.b16 %v404
    %v1038 = vunpack.c.l.b16 %v405
    %v1039 = vunpack.c.l.b16 %v406
    %v1040 = vunpack.c.l.b16 %v407
    %v1041 = vunpack.c.l.b16 %v408
    %v1042 = vunpack.c.l.b16 %v409
    %v1043 = vunpack.c.l.b16 %v410
    %v1044 = vunpack.c.l.b16 %v411
    %v1045 = vunpack.c.l.b16 %v412
    %v1046 = vunpack.c.l.b16 %v413
    %v1047 = vpack.c.b16 %v735, %v734
    %v1048 = vpack.c.b16 %v737, %v736
    %v1049 = vpack.c.b16 %v739, %v738
    %v1050 = vpack.c.b16 %v741, %v740
    %v1051 = vpack.c.b16 %v743, %v742
    %v1052 = vpack.c.b16 %v745, %v744
    %v1053 = vpack.c.b16 %v747, %v746
    %v1054 = vpack.c.b16 %v749, %v748
    %v1055 = vpack.c.b16 %v751, %v750
    %v1056 = vpack.c.b16 %v753, %v752
    %v1057 = vpack.c.b16 %v755, %v754
    %v1058 = vpack.c.b16 %v757, %v756
    %v1059 = vpack.c.b16 %v759, %v758
    %v1060 = vpack.c.b16 %v761, %v760
    %v1061 = vpack.c.b16 %v763, %v762
    %v1062 = vpack.c.b16 %v765, %v764
    %v1063 = vpack.c.b16 %v767, %v766
    %v1064 = vpack.c.b16 %v769, %v768
    %v1065 = vpack.c.b16 %v771, %v770
    %v1066 = vpack.c.b16 %v773, %v772
    %v1067 = vpack.c.b16 %v775, %v774
    %v1068 = vpack.c.b16 %v777, %v776
    %v1069 = vpack.c.b16 %v779, %v778
    %v1070 = vpack.c.b16 %v781, %v780
    %v1071 = vpack.c.b16 %v783, %v782
    %v1072 = vpack.c.b16 %v785, %v784
    %v1073 = vpack.c.b16 %v787, %v786
    %v1074 = vpack.c.b16 %v789, %v788
    %v1075 = vpack.c.b16 %v791, %v790
    %v1076 = vpack.c.b16 %v793, %v792
    %v1077 = vpack.c.b16 %v795, %v794
    %v1078 = vpack.c.b16 %v797, %v796
    %v1079 = vpack.c.b16 %v799, %v798
    %v1080 = vpack.c.b16 %v801, %v800
    %v1081 = vpack.c.b16 %v803, %v802
    %v1082 = vpack.c.b16 %v805, %v804
    %v1083 = vpack.c.b16 %v807, %v806
    %v1084 = vpack.c.b16 %v809, %v808
    %v1085 = vpack.c.b16 %v811, %v810
    %v1086 = vpack.c.b16 %v813, %v812
    %v1087 = vpack.c.b16 %v815, %v814
    %v1088 = vpack.c.b16 %v817, %v816
    %v1089 = vpack.c.b16 %v819, %v818
    %v1090 = vpack.c.b16 %v821, %v820
    %v1091 = vpack.c.b16 %v823, %v822
    %v1092 = vpack.c.b16 %v825, %v824
    %v1093 = vpack.c.b16 %v827, %v826
    %v1094 = vpack.c.b16 %v829, %v828
    %v1095 = vpack.c.b16 %v831, %v830
    %v1096 = vpack.c.b16 %v833, %v832
    %v1097 = vpack.c.b16 %v835, %v834
    %v1098 = vpack.c.b16 %v837, %v836
    %v1099 = vpack.c.b16 %v839, %v838
    %v1100 = vpack.c.b16 %v841, %v840
    %v1101 = vpack.c.b16 %v843, %v842
    %v1102 = vpack.c.b16 %v845, %v844
    %v1103 = vpack.c.b16 %v847, %v846
    %v1104 = vpack.c.b16 %v849, %v848
    %v1105 = vpack.c.b16 %v851, %v850
    %v1106 = vpack.c.b16 %v853, %v852
    %v1107 = vpack.c.b16 %v855, %v854
    %v1108 = vpack.c.b16 %v857, %v856
    %v1109 = vpack.c.b16 %v859, %v858
    %v1110 = vpack.c.b16 %v861, %v860
    %v1111 = vpack.c.b16 %v863, %v862
    %v1112 = vpack.c.b16 %v865, %v864
    %v1113 = vpack.c.b16 %v867, %v866
    %v1114 = vpack.c.b16 %v869, %v868
    %v1115 = vpack.c.b16 %v871, %v870
    %v1116 = vpack.c.b16 %v873, %v872
    %v1117 = vpack.c.b16 %v875, %v874
    %v1118 = vpack.c.b16 %v877, %v876
    %v1119 = vpack.c.b16 %v879, %v878
    %v1120 = vpack.c.b16 %v881, %v880
    %v1121 = vpack.c.b16 %v883, %v882
    %v1122 = vpack.c.b16 %v885, %v884
    %v1123 = vpack.c.b16 %v887, %v886
    %v1124 = vpack.c.b16 %v889, %v888
    %v1125 = vpack.c.b16 %v891, %v890
    %v1126 = vpack.c.b16 %v893, %v892
    %v1127 = vpack.c.b16 %v895, %v894
    %v1128 = vpack.c.b16 %v897, %v896
    %v1129 = vpack.c.b16 %v899, %v898
    %v1130 = vpack.c.b16 %v901, %v900
    %v1131 = vpack.c.b16 %v903, %v902
    %v1132 = vpack.c.b16 %v905, %v904
    %v1133 = vpack.c.b16 %v907, %v906
    %v1134 = vpack.c.b16 %v909, %v908
    %v1135 = vpack.c.b16 %v911, %v910
    %v1136 = vpack.c.b16 %v913, %v912
    %v1137 = vpack.c.b16 %v915, %v914
    %v1138 = vpack.c.b16 %v917, %v916
    %v1139 = vpack.c.b16 %v919, %v918
    %v1140 = vpack.c.b16 %v921, %v920
    %v1141 = vpack.c.b16 %v923, %v922
    %v1142 = vpack.c.b16 %v925, %v924
    %v1143 = vpack.c.b16 %v927, %v926
    %v1144 = vpack.c.b16 %v929, %v928
    %v1145 = vpack.c.b16 %v931, %v930
    %v1146 = vpack.c.b16 %v933, %v932
    %v1147 = vpack.c.b16 %v935, %v934
    %v1148 = vpack.c.b16 %v937, %v936
    %v1149 = vpack.c.b16 %v939, %v938
    %v1150 = vpack.c.b16 %v941, %v940
    %v1151 = vpack.c.b16 %v943, %v942
    %v1152 = vpack.c.b16 %v945, %v944
    %v1153 = vpack.c.b16 %v947, %v946
    %v1154 = vpack.c.b16 %v949, %v948
    %v1155 = vpack.c.b16 %v951, %v950
    %v1156 = vpack.c.b16 %v953, %v952
    %v1157 = vpack.c.b16 %v955, %v954
    %v1158 = vpack.c.b16 %v957, %v956
    %v1159 = vpack.c.b16 %v959, %v958
    %v1160 = vpack.c.b16 %v961, %v960
    %v1161 = vpack.c.b16 %v963, %v962
    %v1162 = vpack.c.b16 %v965, %v964
    %v1163 = vpack.c.b16 %v967, %v966
    %v1164 = vpack.c.b16 %v969, %v968
    %v1165 = vpack.c.b16 %v971, %v970
    %v1166 = vpack.c.b16 %v973, %v972
    %v1167 = vpack.c.b16 %v975, %v974
    %v1168 = vpack.c.b16 %v977, %v976
    %v1169 = vpack.c.b16 %v979, %v978
    %v1170 = vpack.c.b16 %v981, %v980
    %v1171 = vpack.c.b16 %v983, %v982
    %v1172 = vpack.c.b16 %v985, %v984
    %v1173 = vpack.c.b16 %v987, %v986
    %v1174 = vpack.c.b16 %v989, %v988
    %v1175 = vpack.c.b16 %v991, %v990
    %v1176 = vpack.c.b16 %v993, %v992
    %v1177 = vpack.c.b16 %v995, %v994
    %v1178 = vpack.c.b16 %v997, %v996
    %v1179 = vpack.c.b16 %v999, %v998
    %v1180 = vpack.c.b16 %v1001, %v1000
    %v1181 = vpack.c.b16 %v1003, %v1002
    %v1182 = vpack.c.b16 %v1005, %v1004
    %v1183 = vpack.c.b16 %v1007, %v1006
    %v1184 = vpack.c.b16 %v1009, %v1008
    %v1185 = vpack.c.b16 %v1011, %v1010
    %v1186 = vpack.c.b16 %v1013, %v1012
    %v1187 = vpack.c.b16 %v1015, %v1014
    %v1188 = vpack.c.b16 %v1017, %v1016
    %v1189 = vpack.c.b16 %v1019, %v1018
    %v1190 = vpack.c.b16 %v1021, %v1020
    %v1191 = vpack.c.b16 %v1023, %v1022
    %v1192 = vpack.c.b16 %v1025, %v1024
    %v1193 = vpack.c.b16 %v1027, %v1026
    %v1194 = vpack.c.b16 %v1029, %v1028
    %v1195 = vpack.c.b16 %v1031, %v1030
    %v1196 = vpack.c.b16 %v1033, %v1032
    %v1197 = vpack.c.b16 %v1035, %v1034
    %v1198 = vpack.c.b16 %v1037, %v1036
    %v1199 = vpack.c.b16 %v1039, %v1038
    %v1200 = vpack.c.b16 %v1041, %v1040
    %v1201 = vpack.c.b16 %v1043, %v1042
    %v1202 = vpack.c.b16 %v1045, %v1044
    %v1203 = vpack.c.b16 %v1046, %v1046
    %vm1360 = vcmask 556032
    %v1362 = vsel %vm1360, %v100, 0
    %vm1364 = vcmask 1041408
    %v1366 = vsel %vm1364, %v1203, 0
    %1368 = vmatprep.subr.bf16.mxu0 0
    %1369 = vmatpush1.bf16.msra.mxu0 %v1054
    %1370 = vmatprep.subr.bf16.mxu0 0
    %1371 = vmatpush1.bf16.msra.mxu0 %v1053
    %1372 = vmatprep.subr.bf16.mxu0 0
    %1373 = vmatpush1.bf16.msra.mxu0 %v1052
    %1374 = vmatprep.subr.bf16.mxu0 0
    %1375 = vmatpush1.bf16.msra.mxu0 %v1051
    %1376 = vmatprep.subr.bf16.mxu0 0
    %1377 = vmatpush1.bf16.msra.mxu0 %v1050
    %1378 = vmatprep.subr.bf16.mxu0 0
    %1379 = vmatpush1.bf16.msra.mxu0 %v1049
    %1380 = vmatprep.subr.bf16.mxu0 0
    %1381 = vmatpush1.bf16.msra.mxu0 %v1048
    %1382 = vmatprep.subr.bf16.mxu0 0
    %1383 = vmatpush1.bf16.msra.mxu0 %v1047
    %1384 = vmatprep.subr.bf16.mxu0 0
    %1385 = vmatpush2.bf16.msra.mxu0 %v1062
    %1386 = vmatprep.subr.bf16.mxu0 0
    %1387 = vmatpush2.bf16.msra.mxu0 %v1061
    %1388 = vmatprep.subr.bf16.mxu0 0
    %1389 = vmatpush2.bf16.msra.mxu0 %v1060
    %1390 = vmatprep.subr.bf16.mxu0 0
    %1391 = vmatpush2.bf16.msra.mxu0 %v1059
    %1392 = vmatprep.subr.bf16.mxu0 0
    %1393 = vmatpush2.bf16.msra.mxu0 %v1058
    %1394 = vmatprep.subr.bf16.mxu0 0
    %1395 = vmatpush2.bf16.msra.mxu0 %v1057
    %1396 = vmatprep.subr.bf16.mxu0 0
    %1397 = vmatpush2.bf16.msra.mxu0 %v1056
    %1398 = vmatprep.subr.bf16.mxu0 0
    %1399 = vmatpush2.bf16.msra.mxu0 %v1055
    %1400 = vmatprep.mubr.bf16.mxu0 %v82
    %1401 = vmatmul.mubr.bf16.gmra.mxu0 %v81
    %v1402 = vpop.f32.mrf.mxu0
    %v1403 = vadd.f32 %v419, %v1402
    %v1404 = vpop.f32.mrf.mxu0
    %v1405 = vpop.f32.mrf.mxu0
    %v1406 = vadd.f32 %v419, %v1405
    %v1407 = vpop.f32.mrf.mxu0
    %1408 = vdwg.mxu0
    %1409 = vmatprep.subr.bf16.mxu0 0
    %1410 = vmatpush1.bf16.msra.mxu0 %v1070
    %1411 = vmatprep.subr.bf16.mxu0 0
    %1412 = vmatpush1.bf16.msra.mxu0 %v1069
    %1413 = vmatprep.subr.bf16.mxu0 0
    %1414 = vmatpush1.bf16.msra.mxu0 %v1068
    %1415 = vmatprep.subr.bf16.mxu0 0
    %1416 = vmatpush1.bf16.msra.mxu0 %v1067
    %1417 = vmatprep.subr.bf16.mxu0 0
    %1418 = vmatpush1.bf16.msra.mxu0 %v1066
    %1419 = vmatprep.subr.bf16.mxu0 0
    %1420 = vmatpush1.bf16.msra.mxu0 %v1065
    %1421 = vmatprep.subr.bf16.mxu0 0
    %1422 = vmatpush1.bf16.msra.mxu0 %v1064
    %1423 = vmatprep.subr.bf16.mxu0 0
    %1424 = vmatpush1.bf16.msra.mxu0 %v1063
    %1425 = vmatprep.subr.bf16.mxu0 0
    %1426 = vmatpush2.bf16.msra.mxu0 %v1078
    %1427 = vmatprep.subr.bf16.mxu0 0
    %1428 = vmatpush2.bf16.msra.mxu0 %v1077
    %1429 = vmatprep.subr.bf16.mxu0 0
    %1430 = vmatpush2.bf16.msra.mxu0 %v1076
    %1431 = vmatprep.subr.bf16.mxu0 0
    %1432 = vmatpush2.bf16.msra.mxu0 %v1075
    %1433 = vmatprep.subr.bf16.mxu0 0
    %1434 = vmatpush2.bf16.msra.mxu0 %v1074
    %1435 = vmatprep.subr.bf16.mxu0 0
    %1436 = vmatpush2.bf16.msra.mxu0 %v1073
    %1437 = vmatprep.subr.bf16.mxu0 0
    %1438 = vmatpush2.bf16.msra.mxu0 %v1072
    %1439 = vmatprep.subr.bf16.mxu0 0
    %1440 = vmatpush2.bf16.msra.mxu0 %v1071
    %1441 = vmatprep.mubr.bf16.mxu0 %v84
    %1442 = vmatmul.mubr.bf16.gmra.mxu0 %v83
    %v1443 = vpop.f32.mrf.mxu0
    %v1444 = vadd.f32 %v1403, %v1443
    %v1445 = vpop.f32.mrf.mxu0
    %v1446 = vpop.f32.mrf.mxu0
    %v1447 = vadd.f32 %v1406, %v1446
    %v1448 = vpop.f32.mrf.mxu0
    %1449 = vdwg.mxu0
    %1450 = vmatprep.subr.bf16.mxu0 0
    %1451 = vmatpush1.bf16.msra.mxu0 %v1086
    %1452 = vmatprep.subr.bf16.mxu0 0
    %1453 = vmatpush1.bf16.msra.mxu0 %v1085
    %1454 = vmatprep.subr.bf16.mxu0 0
    %1455 = vmatpush1.bf16.msra.mxu0 %v1084
    %1456 = vmatprep.subr.bf16.mxu0 0
    %1457 = vmatpush1.bf16.msra.mxu0 %v1083
    %1458 = vmatprep.subr.bf16.mxu0 0
    %1459 = vmatpush1.bf16.msra.mxu0 %v1082
    %1460 = vmatprep.subr.bf16.mxu0 0
    %1461 = vmatpush1.bf16.msra.mxu0 %v1081
    %1462 = vmatprep.subr.bf16.mxu0 0
    %1463 = vmatpush1.bf16.msra.mxu0 %v1080
    %1464 = vmatprep.subr.bf16.mxu0 0
    %1465 = vmatpush1.bf16.msra.mxu0 %v1079
    %1466 = vmatprep.subr.bf16.mxu0 0
    %1467 = vmatpush2.bf16.msra.mxu0 %v1094
    %1468 = vmatprep.subr.bf16.mxu0 0
    %1469 = vmatpush2.bf16.msra.mxu0 %v1093
    %1470 = vmatprep.subr.bf16.mxu0 0
    %1471 = vmatpush2.bf16.msra.mxu0 %v1092
    %1472 = vmatprep.subr.bf16.mxu0 0
    %1473 = vmatpush2.bf16.msra.mxu0 %v1091
    %1474 = vmatprep.subr.bf16.mxu0 0
    %1475 = vmatpush2.bf16.msra.mxu0 %v1090
    %1476 = vmatprep.subr.bf16.mxu0 0
    %1477 = vmatpush2.bf16.msra.mxu0 %v1089
    %1478 = vmatprep.subr.bf16.mxu0 0
    %1479 = vmatpush2.bf16.msra.mxu0 %v1088
    %1480 = vmatprep.subr.bf16.mxu0 0
    %1481 = vmatpush2.bf16.msra.mxu0 %v1087
    %1482 = vmatprep.mubr.bf16.mxu0 %v86
    %1483 = vmatmul.mubr.bf16.gmra.mxu0 %v85
    %v1484 = vpop.f32.mrf.mxu0
    %v1485 = vadd.f32 %v1444, %v1484
    %v1486 = vpop.f32.mrf.mxu0
    %v1487 = vpop.f32.mrf.mxu0
    %v1488 = vadd.f32 %v1447, %v1487
    %v1489 = vpop.f32.mrf.mxu0
    %1490 = vdwg.mxu0
    %1491 = vmatprep.subr.bf16.mxu0 0
    %1492 = vmatpush1.bf16.msra.mxu0 %v1102
    %1493 = vmatprep.subr.bf16.mxu0 0
    %1494 = vmatpush1.bf16.msra.mxu0 %v1101
    %1495 = vmatprep.subr.bf16.mxu0 0
    %1496 = vmatpush1.bf16.msra.mxu0 %v1100
    %1497 = vmatprep.subr.bf16.mxu0 0
    %1498 = vmatpush1.bf16.msra.mxu0 %v1099
    %1499 = vmatprep.subr.bf16.mxu0 0
    %1500 = vmatpush1.bf16.msra.mxu0 %v1098
    %1501 = vmatprep.subr.bf16.mxu0 0
    %1502 = vmatpush1.bf16.msra.mxu0 %v1097
    %1503 = vmatprep.subr.bf16.mxu0 0
    %1504 = vmatpush1.bf16.msra.mxu0 %v1096
    %1505 = vmatprep.subr.bf16.mxu0 0
    %1506 = vmatpush1.bf16.msra.mxu0 %v1095
    %1507 = vmatprep.subr.bf16.mxu0 0
    %1508 = vmatpush2.bf16.msra.mxu0 %v1110
    %1509 = vmatprep.subr.bf16.mxu0 0
    %1510 = vmatpush2.bf16.msra.mxu0 %v1109
    %1511 = vmatprep.subr.bf16.mxu0 0
    %1512 = vmatpush2.bf16.msra.mxu0 %v1108
    %1513 = vmatprep.subr.bf16.mxu0 0
    %1514 = vmatpush2.bf16.msra.mxu0 %v1107
    %1515 = vmatprep.subr.bf16.mxu0 0
    %1516 = vmatpush2.bf16.msra.mxu0 %v1106
    %1517 = vmatprep.subr.bf16.mxu0 0
    %1518 = vmatpush2.bf16.msra.mxu0 %v1105
    %1519 = vmatprep.subr.bf16.mxu0 0
    %1520 = vmatpush2.bf16.msra.mxu0 %v1104
    %1521 = vmatprep.subr.bf16.mxu0 0
    %1522 = vmatpush2.bf16.msra.mxu0 %v1103
    %1523 = vmatprep.mubr.bf16.mxu0 %v88
    %1524 = vmatmul.mubr.bf16.gmra.mxu0 %v87
    %v1525 = vpop.f32.mrf.mxu0
    %v1526 = vadd.f32 %v1485, %v1525
    %v1527 = vpop.f32.mrf.mxu0
    %v1528 = vpop.f32.mrf.mxu0
    %v1529 = vadd.f32 %v1488, %v1528
    %v1530 = vpop.f32.mrf.mxu0
    %1531 = vdwg.mxu0
    %1532 = vmatprep.subr.bf16.mxu0 0
    %1533 = vmatpush1.bf16.msra.mxu0 %v1118
    %1534 = vmatprep.subr.bf16.mxu0 0
    %1535 = vmatpush1.bf16.msra.mxu0 %v1117
    %1536 = vmatprep.subr.bf16.mxu0 0
    %1537 = vmatpush1.bf16.msra.mxu0 %v1116
    %1538 = vmatprep.subr.bf16.mxu0 0
    %1539 = vmatpush1.bf16.msra.mxu0 %v1115
    %1540 = vmatprep.subr.bf16.mxu0 0
    %1541 = vmatpush1.bf16.msra.mxu0 %v1114
    %1542 = vmatprep.subr.bf16.mxu0 0
    %1543 = vmatpush1.bf16.msra.mxu0 %v1113
    %1544 = vmatprep.subr.bf16.mxu0 0
    %1545 = vmatpush1.bf16.msra.mxu0 %v1112
    %1546 = vmatprep.subr.bf16.mxu0 0
    %1547 = vmatpush1.bf16.msra.mxu0 %v1111
    %1548 = vmatprep.subr.bf16.mxu0 0
    %1549 = vmatpush2.bf16.msra.mxu0 %v1126
    %1550 = vmatprep.subr.bf16.mxu0 0
    %1551 = vmatpush2.bf16.msra.mxu0 %v1125
    %1552 = vmatprep.subr.bf16.mxu0 0
    %1553 = vmatpush2.bf16.msra.mxu0 %v1124
    %1554 = vmatprep.subr.bf16.mxu0 0
    %1555 = vmatpush2.bf16.msra.mxu0 %v1123
    %1556 = vmatprep.subr.bf16.mxu0 0
    %1557 = vmatpush2.bf16.msra.mxu0 %v1122
    %1558 = vmatprep.subr.bf16.mxu0 0
    %1559 = vmatpush2.bf16.msra.mxu0 %v1121
    %1560 = vmatprep.subr.bf16.mxu0 0
    %1561 = vmatpush2.bf16.msra.mxu0 %v1120
    %1562 = vmatprep.subr.bf16.mxu0 0
    %1563 = vmatpush2.bf16.msra.mxu0 %v1119
    %1564 = vmatprep.mubr.bf16.mxu0 %v90
    %1565 = vmatmul.mubr.bf16.gmra.mxu0 %v89
    %v1566 = vpop.f32.mrf.mxu0
    %v1567 = vadd.f32 %v1526, %v1566
    %v1568 = vpop.f32.mrf.mxu0
    %v1569 = vpop.f32.mrf.mxu0
    %v1570 = vadd.f32 %v1529, %v1569
    %v1571 = vpop.f32.mrf.mxu0
    %1572 = vdwg.mxu0
    %1573 = vmatprep.subr.bf16.mxu0 0
    %1574 = vmatpush1.bf16.msra.mxu0 %v1134
    %1575 = vmatprep.subr.bf16.mxu0 0
    %1576 = vmatpush1.bf16.msra.mxu0 %v1133
    %1577 = vmatprep.subr.bf16.mxu0 0
    %1578 = vmatpush1.bf16.msra.mxu0 %v1132
    %1579 = vmatprep.subr.bf16.mxu0 0
    %1580 = vmatpush1.bf16.msra.mxu0 %v1131
    %1581 = vmatprep.subr.bf16.mxu0 0
    %1582 = vmatpush1.bf16.msra.mxu0 %v1130
    %1583 = vmatprep.subr.bf16.mxu0 0
    %1584 = vmatpush1.bf16.msra.mxu0 %v1129
    %1585 = vmatprep.subr.bf16.mxu0 0
    %1586 = vmatpush1.bf16.msra.mxu0 %v1128
    %1587 = vmatprep.subr.bf16.mxu0 0
    %1588 = vmatpush1.bf16.msra.mxu0 %v1127
    %1589 = vmatprep.subr.bf16.mxu0 0
    %1590 = vmatpush2.bf16.msra.mxu0 %v1142
    %1591 = vmatprep.subr.bf16.mxu0 0
    %1592 = vmatpush2.bf16.msra.mxu0 %v1141
    %1593 = vmatprep.subr.bf16.mxu0 0
    %1594 = vmatpush2.bf16.msra.mxu0 %v1140
    %1595 = vmatprep.subr.bf16.mxu0 0
    %1596 = vmatpush2.bf16.msra.mxu0 %v1139
    %1597 = vmatprep.subr.bf16.mxu0 0
    %1598 = vmatpush2.bf16.msra.mxu0 %v1138
    %1599 = vmatprep.subr.bf16.mxu0 0
    %1600 = vmatpush2.bf16.msra.mxu0 %v1137
    %1601 = vmatprep.subr.bf16.mxu0 0
    %1602 = vmatpush2.bf16.msra.mxu0 %v1136
    %1603 = vmatprep.subr.bf16.mxu0 0
    %1604 = vmatpush2.bf16.msra.mxu0 %v1135
    %1605 = vmatprep.mubr.bf16.mxu0 %v92
    %1606 = vmatmul.mubr.bf16.gmra.mxu0 %v91
    %v1607 = vpop.f32.mrf.mxu0
    %v1608 = vadd.f32 %v1567, %v1607
    %v1609 = vpop.f32.mrf.mxu0
    %v1610 = vpop.f32.mrf.mxu0
    %v1611 = vadd.f32 %v1570, %v1610
    %v1612 = vpop.f32.mrf.mxu0
    %1613 = vdwg.mxu0
    %1614 = vmatprep.subr.bf16.mxu0 0
    %1615 = vmatpush1.bf16.msra.mxu0 %v1150
    %1616 = vmatprep.subr.bf16.mxu0 0
    %1617 = vmatpush1.bf16.msra.mxu0 %v1149
    %1618 = vmatprep.subr.bf16.mxu0 0
    %1619 = vmatpush1.bf16.msra.mxu0 %v1148
    %1620 = vmatprep.subr.bf16.mxu0 0
    %1621 = vmatpush1.bf16.msra.mxu0 %v1147
    %1622 = vmatprep.subr.bf16.mxu0 0
    %1623 = vmatpush1.bf16.msra.mxu0 %v1146
    %1624 = vmatprep.subr.bf16.mxu0 0
    %1625 = vmatpush1.bf16.msra.mxu0 %v1145
    %1626 = vmatprep.subr.bf16.mxu0 0
    %1627 = vmatpush1.bf16.msra.mxu0 %v1144
    %1628 = vmatprep.subr.bf16.mxu0 0
    %1629 = vmatpush1.bf16.msra.mxu0 %v1143
    %1630 = vmatprep.subr.bf16.mxu0 0
    %1631 = vmatpush2.bf16.msra.mxu0 %v1158
    %1632 = vmatprep.subr.bf16.mxu0 0
    %1633 = vmatpush2.bf16.msra.mxu0 %v1157
    %1634 = vmatprep.subr.bf16.mxu0 0
    %1635 = vmatpush2.bf16.msra.mxu0 %v1156
    %1636 = vmatprep.subr.bf16.mxu0 0
    %1637 = vmatpush2.bf16.msra.mxu0 %v1155
    %1638 = vmatprep.subr.bf16.mxu0 0
    %1639 = vmatpush2.bf16.msra.mxu0 %v1154
    %1640 = vmatprep.subr.bf16.mxu0 0
    %1641 = vmatpush2.bf16.msra.mxu0 %v1153
    %1642 = vmatprep.subr.bf16.mxu0 0
    %1643 = vmatpush2.bf16.msra.mxu0 %v1152
    %1644 = vmatprep.subr.bf16.mxu0 0
    %1645 = vmatpush2.bf16.msra.mxu0 %v1151
    %1646 = vmatprep.mubr.bf16.mxu0 %v94
    %1647 = vmatmul.mubr.bf16.gmra.mxu0 %v93
    %v1648 = vpop.f32.mrf.mxu0
    %v1649 = vadd.f32 %v1608, %v1648
    %v1650 = vpop.f32.mrf.mxu0
    %v1651 = vpop.f32.mrf.mxu0
    %v1652 = vadd.f32 %v1611, %v1651
    %v1653 = vpop.f32.mrf.mxu0
    %1654 = vdwg.mxu0
    %1655 = vmatprep.subr.bf16.mxu0 0
    %1656 = vmatpush1.bf16.msra.mxu0 %v1166
    %1657 = vmatprep.subr.bf16.mxu0 0
    %1658 = vmatpush1.bf16.msra.mxu0 %v1165
    %1659 = vmatprep.subr.bf16.mxu0 0
    %1660 = vmatpush1.bf16.msra.mxu0 %v1164
    %1661 = vmatprep.subr.bf16.mxu0 0
    %1662 = vmatpush1.bf16.msra.mxu0 %v1163
    %1663 = vmatprep.subr.bf16.mxu0 0
    %1664 = vmatpush1.bf16.msra.mxu0 %v1162
    %1665 = vmatprep.subr.bf16.mxu0 0
    %1666 = vmatpush1.bf16.msra.mxu0 %v1161
    %1667 = vmatprep.subr.bf16.mxu0 0
    %1668 = vmatpush1.bf16.msra.mxu0 %v1160
    %1669 = vmatprep.subr.bf16.mxu0 0
    %1670 = vmatpush1.bf16.msra.mxu0 %v1159
    %1671 = vmatprep.subr.bf16.mxu0 0
    %1672 = vmatpush2.bf16.msra.mxu0 %v1174
    %1673 = vmatprep.subr.bf16.mxu0 0
    %1674 = vmatpush2.bf16.msra.mxu0 %v1173
    %1675 = vmatprep.subr.bf16.mxu0 0
    %1676 = vmatpush2.bf16.msra.mxu0 %v1172
    %1677 = vmatprep.subr.bf16.mxu0 0
    %1678 = vmatpush2.bf16.msra.mxu0 %v1171
    %1679 = vmatprep.subr.bf16.mxu0 0
    %1680 = vmatpush2.bf16.msra.mxu0 %v1170
    %1681 = vmatprep.subr.bf16.mxu0 0
    %1682 = vmatpush2.bf16.msra.mxu0 %v1169
    %1683 = vmatprep.subr.bf16.mxu0 0
    %1684 = vmatpush2.bf16.msra.mxu0 %v1168
    %1685 = vmatprep.subr.bf16.mxu0 0
    %1686 = vmatpush2.bf16.msra.mxu0 %v1167
    %1687 = vmatprep.mubr.bf16.mxu0 %v96
    %1688 = vmatmul.mubr.bf16.gmra.mxu0 %v95
    %v1689 = vpop.f32.mrf.mxu0
    %v1690 = vadd.f32 %v1649, %v1689
    %v1691 = vpop.f32.mrf.mxu0
    %v1692 = vpop.f32.mrf.mxu0
    %v1693 = vadd.f32 %v1652, %v1692
    %v1694 = vpop.f32.mrf.mxu0
    %1695 = vdwg.mxu0
    %1696 = vmatprep.subr.bf16.mxu0 0
    %1697 = vmatpush1.bf16.msra.mxu0 %v1182
    %1698 = vmatprep.subr.bf16.mxu0 0
    %1699 = vmatpush1.bf16.msra.mxu0 %v1181
    %1700 = vmatprep.subr.bf16.mxu0 0
    %1701 = vmatpush1.bf16.msra.mxu0 %v1180
    %1702 = vmatprep.subr.bf16.mxu0 0
    %1703 = vmatpush1.bf16.msra.mxu0 %v1179
    %1704 = vmatprep.subr.bf16.mxu0 0
    %1705 = vmatpush1.bf16.msra.mxu0 %v1178
    %1706 = vmatprep.subr.bf16.mxu0 0
    %1707 = vmatpush1.bf16.msra.mxu0 %v1177
    %1708 = vmatprep.subr.bf16.mxu0 0
    %1709 = vmatpush1.bf16.msra.mxu0 %v1176
    %1710 = vmatprep.subr.bf16.mxu0 0
    %1711 = vmatpush1.bf16.msra.mxu0 %v1175
    %1712 = vmatprep.subr.bf16.mxu0 0
    %1713 = vmatpush2.bf16.msra.mxu0 %v1190
    %1714 = vmatprep.subr.bf16.mxu0 0
    %1715 = vmatpush2.bf16.msra.mxu0 %v1189
    %1716 = vmatprep.subr.bf16.mxu0 0
    %1717 = vmatpush2.bf16.msra.mxu0 %v1188
    %1718 = vmatprep.subr.bf16.mxu0 0
    %1719 = vmatpush2.bf16.msra.mxu0 %v1187
    %1720 = vmatprep.subr.bf16.mxu0 0
    %1721 = vmatpush2.bf16.msra.mxu0 %v1186
    %1722 = vmatprep.subr.bf16.mxu0 0
    %1723 = vmatpush2.bf16.msra.mxu0 %v1185
    %1724 = vmatprep.subr.bf16.mxu0 0
    %1725 = vmatpush2.bf16.msra.mxu0 %v1184
    %1726 = vmatprep.subr.bf16.mxu0 0
    %1727 = vmatpush2.bf16.msra.mxu0 %v1183
    %1728 = vmatprep.mubr.bf16.mxu0 %v98
    %1729 = vmatmul.mubr.bf16.gmra.mxu0 %v97
    %v1730 = vpop.f32.mrf.mxu0
    %v1731 = vadd.f32 %v1690, %v1730
    %v1732 = vpop.f32.mrf.mxu0
    %v1733 = vpop.f32.mrf.mxu0
    %v1734 = vadd.f32 %v1693, %v1733
    %v1735 = vpop.f32.mrf.mxu0
    %1736 = vdwg.mxu0
    %1737 = vmatprep.subr.bf16.mxu0 0
    %1738 = vmatpush1.bf16.msra.mxu0 %v1198
    %1739 = vmatprep.subr.bf16.mxu0 0
    %1740 = vmatpush1.bf16.msra.mxu0 %v1197
    %1741 = vmatprep.subr.bf16.mxu0 0
    %1742 = vmatpush1.bf16.msra.mxu0 %v1196
    %1743 = vmatprep.subr.bf16.mxu0 0
    %1744 = vmatpush1.bf16.msra.mxu0 %v1195
    %1745 = vmatprep.subr.bf16.mxu0 0
    %1746 = vmatpush1.bf16.msra.mxu0 %v1194
    %1747 = vmatprep.subr.bf16.mxu0 0
    %1748 = vmatpush1.bf16.msra.mxu0 %v1193
    %1749 = vmatprep.subr.bf16.mxu0 0
    %1750 = vmatpush1.bf16.msra.mxu0 %v1192
    %1751 = vmatprep.subr.bf16.mxu0 0
    %1752 = vmatpush1.bf16.msra.mxu0 %v1191
    %1753 = vmatprep.subr.bf16.mxu0 0
    %1754 = vmatpush2.bf16.msra.mxu0 0
    %1755 = vmatprep.subr.bf16.mxu0 0
    %1756 = vmatpush2.bf16.msra.mxu0 0
    %1757 = vmatprep.subr.bf16.mxu0 0
    %1758 = vmatpush2.bf16.msra.mxu0 0
    %1759 = vmatprep.subr.bf16.mxu0 0
    %1760 = vmatpush2.bf16.msra.mxu0 %v1366
    %1761 = vmatprep.subr.bf16.mxu0 0
    %1762 = vmatpush2.bf16.msra.mxu0 %v1202
    %1763 = vmatprep.subr.bf16.mxu0 0
    %1764 = vmatpush2.bf16.msra.mxu0 %v1201
    %1765 = vmatprep.subr.bf16.mxu0 0
    %1766 = vmatpush2.bf16.msra.mxu0 %v1200
    %1767 = vmatprep.subr.bf16.mxu0 0
    %1768 = vmatpush2.bf16.msra.mxu0 %v1199
    %1769 = vmatprep.mubr.bf16.mxu0 %v1362
    %1770 = vmatmul.mubr.bf16.gmra.mxu0 %v99
    %v1771 = vpop.f32.mrf.mxu0
    %v1772 = vadd.f32 %v1731, %v1771
    %v1773 = vpop.f32.mrf.mxu0
    %v1774 = vpop.f32.mrf.mxu0
    %v1775 = vadd.f32 %v1734, %v1774
    %v1776 = vpop.f32.mrf.mxu0
    %1777 = vdwg.mxu0
    %v1778 = vmax.f32 %v1772, 0.0
    %v1779 = vmax.f32 %v1775, 0.0
    %v1780 = vpack.c.bf16 %v1779, %v1778
    %v1781 = vld [vmem:[%s3] sm:$0xf]
    %v1782 = vld [vmem:[%s3 + $0x4] sm:$0xf]
    %v1783 = vld [vmem:[%s3 + $0x8] sm:$0xf]
    %v1784 = vld [vmem:[%s3 + $0xc] sm:$0xf]
    %v1785 = vld [vmem:[%s3 + $0x10] sm:$0xf]
    %v1786 = vld [vmem:[%s3 + $0x14] sm:$0xf]
    %v1787 = vld [vmem:[%s3 + $0x18] sm:$0xf]
    %v1788 = vld [vmem:[%s3 + $0x1c] sm:$0xf]
    %v1789 = vld [vmem:[%s3 + $0x20] sm:$0xf]
    %v1790 = vld [vmem:[%s3 + $0x24] sm:$0xf]
    %v1791 = vld [vmem:[%s3 + $0x28] sm:$0xf]
    %v1792 = vld [vmem:[%s3 + $0x2c] sm:$0xf]
    %v1793 = vld [vmem:[%s3 + $0x30] sm:$0xf]
    %v1794 = vld [vmem:[%s3 + $0x34] sm:$0xf]
    %v1795 = vld [vmem:[%s3 + $0x38] sm:$0xf]
    %v1796 = vld [vmem:[%s3 + $0x3c] sm:$0xf]
    %v1797 = vld [vmem:[%s4] sm:$0x1]
    %v1799 = vlaneseq
    %v1800 = vshrl.u32 %v1799, 7
    %v1801 = vsub.s32 0, %v1800
    %v1802 = vrot.slane %v1797, %v1801
    %v1820 = vunpack.c.l.b16 %v1781
    %v1821 = vunpack.c.l.b16 %v1782
    %v1822 = vunpack.c.l.b16 %v1783
    %v1823 = vunpack.c.l.b16 %v1784
    %v1824 = vunpack.c.l.b16 %v1785
    %v1825 = vunpack.c.l.b16 %v1786
    %v1826 = vunpack.c.l.b16 %v1787
    %v1827 = vunpack.c.l.b16 %v1788
    %v1828 = vunpack.c.l.b16 %v1789
    %v1829 = vunpack.c.l.b16 %v1790
    %v1830 = vunpack.c.l.b16 %v1791
    %v1831 = vunpack.c.l.b16 %v1792
    %v1832 = vunpack.c.l.b16 %v1793
    %v1833 = vunpack.c.l.b16 %v1794
    %v1834 = vunpack.c.l.b16 %v1795
    %v1835 = vunpack.c.l.b16 %v1796
    %v1836 = vpack.c.b16 %v1821, %v1820
    %v1837 = vpack.c.b16 %v1823, %v1822
    %v1838 = vpack.c.b16 %v1825, %v1824
    %v1839 = vpack.c.b16 %v1827, %v1826
    %v1840 = vpack.c.b16 %v1829, %v1828
    %v1841 = vpack.c.b16 %v1831, %v1830
    %v1842 = vpack.c.b16 %v1833, %v1832
    %v1843 = vpack.c.b16 %v1835, %v1834
    %1852 = vmatprep.subr.bf16.mxu0 0
    %1853 = vmatpush1.bf16.msra.mxu0 %v1843
    %1854 = vmatprep.subr.bf16.mxu0 0
    %1855 = vmatpush1.bf16.msra.mxu0 %v1842
    %1856 = vmatprep.subr.bf16.mxu0 0
    %1857 = vmatpush1.bf16.msra.mxu0 %v1841
    %1858 = vmatprep.subr.bf16.mxu0 0
    %1859 = vmatpush1.bf16.msra.mxu0 %v1840
    %1860 = vmatprep.subr.bf16.mxu0 0
    %1861 = vmatpush1.bf16.msra.mxu0 %v1839
    %1862 = vmatprep.subr.bf16.mxu0 0
    %1863 = vmatpush1.bf16.msra.mxu0 %v1838
    %1864 = vmatprep.subr.bf16.mxu0 0
    %1865 = vmatpush1.bf16.msra.mxu0 %v1837
    %1866 = vmatprep.subr.bf16.mxu0 0
    %1867 = vmatpush1.bf16.msra.mxu0 %v1836
    %1868 = vmatprep.subr.bf16.mxu0 0
    %1869 = vmatpush2.bf16.msra.mxu0 0
    %1870 = vmatprep.subr.bf16.mxu0 0
    %1871 = vmatpush2.bf16.msra.mxu0 0
    %1872 = vmatprep.subr.bf16.mxu0 0
    %1873 = vmatpush2.bf16.msra.mxu0 0
    %1874 = vmatprep.subr.bf16.mxu0 0
    %1875 = vmatpush2.bf16.msra.mxu0 0
    %1876 = vmatprep.subr.bf16.mxu0 0
    %1877 = vmatpush2.bf16.msra.mxu0 0
    %1878 = vmatprep.subr.bf16.mxu0 0
    %1879 = vmatpush2.bf16.msra.mxu0 0
    %1880 = vmatprep.subr.bf16.mxu0 0
    %1881 = vmatpush2.bf16.msra.mxu0 0
    %1882 = vmatprep.subr.bf16.mxu0 0
    %1883 = vmatpush2.bf16.msra.mxu0 0
    %1884 = vmatprep.mubr.bf16.mxu0 0
    %1885 = vmatmul.mubr.bf16.gmra.mxu0 %v1780
    %v1886 = vpop.f32.mrf.mxu0
    %v1887 = vadd.f32 %v1802, %v1886
    %v1888 = vpop.f32.mrf.mxu0
    %v1889 = vpop.f32.mrf.mxu0
    %v1890 = vadd.f32 %v1802, %v1889
    %v1891 = vpop.f32.mrf.mxu0
    %1892 = vdwg.mxu0
    %v1893 = vmax.f32 %v1887, 0.0
    %v1894 = vmax.f32 %v1890, 0.0
    %v1895 = vpack.c.bf16 %v1894, %v1893
    %v1896 = vld [vmem:[%s5] sm:$0xf]
    %v1897 = vld [vmem:[%s5 + $0x4] sm:$0xf]
    %v1898 = vld [vmem:[%s5 + $0x8] sm:$0xf]
    %v1899 = vld [vmem:[%s5 + $0xc] sm:$0xf]
    %v1900 = vld [vmem:[%s5 + $0x10] sm:$0xf]
    %v1901 = vld [vmem:[%s5 + $0x14] sm:$0xf]
    %v1902 = vld [vmem:[%s5 + $0x18] sm:$0xf]
    %v1903 = vld [vmem:[%s5 + $0x1c] sm:$0xf]
    %v1904 = vld [vmem:[%s5 + $0x20] sm:$0xf]
    %v1905 = vld [vmem:[%s5 + $0x24] sm:$0xf]
    %v1906 = vld [vmem:[%s5 + $0x28] sm:$0xf]
    %v1907 = vld [vmem:[%s5 + $0x2c] sm:$0xf]
    %v1908 = vld [vmem:[%s5 + $0x30] sm:$0xf]
    %v1909 = vld [vmem:[%s5 + $0x34] sm:$0xf]
    %v1910 = vld [vmem:[%s5 + $0x38] sm:$0xf]
    %v1911 = vld [vmem:[%s5 + $0x3c] sm:$0xf]
    %v1912 = vld [vmem:[%s6] sm:$0x1]
    %v1914 = vlaneseq
    %v1915 = vshrl.u32 %v1914, 7
    %v1916 = vsub.s32 0, %v1915
    %v1917 = vrot.slane %v1912, %v1916
    %v1935 = vunpack.c.l.b16 %v1896
    %v1936 = vunpack.c.l.b16 %v1897
    %v1937 = vunpack.c.l.b16 %v1898
    %v1938 = vunpack.c.l.b16 %v1899
    %v1939 = vunpack.c.l.b16 %v1900
    %v1940 = vunpack.c.l.b16 %v1901
    %v1941 = vunpack.c.l.b16 %v1902
    %v1942 = vunpack.c.l.b16 %v1903
    %v1943 = vunpack.c.l.b16 %v1904
    %v1944 = vunpack.c.l.b16 %v1905
    %v1945 = vunpack.c.l.b16 %v1906
    %v1946 = vunpack.c.l.b16 %v1907
    %v1947 = vunpack.c.l.b16 %v1908
    %v1948 = vunpack.c.l.b16 %v1909
    %v1949 = vunpack.c.l.b16 %v1910
    %v1950 = vunpack.c.l.b16 %v1911
    %v1951 = vpack.c.b16 %v1936, %v1935
    %v1952 = vpack.c.b16 %v1938, %v1937
    %v1953 = vpack.c.b16 %v1940, %v1939
    %v1954 = vpack.c.b16 %v1942, %v1941
    %v1955 = vpack.c.b16 %v1944, %v1943
    %v1956 = vpack.c.b16 %v1946, %v1945
    %v1957 = vpack.c.b16 %v1948, %v1947
    %v1958 = vpack.c.b16 %v1950, %v1949
    %1967 = vmatprep.subr.bf16.mxu0 0
    %1968 = vmatpush1.bf16.msra.mxu0 %v1958
    %1969 = vmatprep.subr.bf16.mxu0 0
    %1970 = vmatpush1.bf16.msra.mxu0 %v1957
    %1971 = vmatprep.subr.bf16.mxu0 0
    %1972 = vmatpush1.bf16.msra.mxu0 %v1956
    %1973 = vmatprep.subr.bf16.mxu0 0
    %1974 = vmatpush1.bf16.msra.mxu0 %v1955
    %1975 = vmatprep.subr.bf16.mxu0 0
    %1976 = vmatpush1.bf16.msra.mxu0 %v1954
    %1977 = vmatprep.subr.bf16.mxu0 0
    %1978 = vmatpush1.bf16.msra.mxu0 %v1953
    %1979 = vmatprep.subr.bf16.mxu0 0
    %1980 = vmatpush1.bf16.msra.mxu0 %v1952
    %1981 = vmatprep.subr.bf16.mxu0 0
    %1982 = vmatpush1.bf16.msra.mxu0 %v1951
    %1983 = vmatprep.subr.bf16.mxu0 0
    %1984 = vmatpush2.bf16.msra.mxu0 0
    %1985 = vmatprep.subr.bf16.mxu0 0
    %1986 = vmatpush2.bf16.msra.mxu0 0
    %1987 = vmatprep.subr.bf16.mxu0 0
    %1988 = vmatpush2.bf16.msra.mxu0 0
    %1989 = vmatprep.subr.bf16.mxu0 0
    %1990 = vmatpush2.bf16.msra.mxu0 0
    %1991 = vmatprep.subr.bf16.mxu0 0
    %1992 = vmatpush2.bf16.msra.mxu0 0
    %1993 = vmatprep.subr.bf16.mxu0 0
    %1994 = vmatpush2.bf16.msra.mxu0 0
    %1995 = vmatprep.subr.bf16.mxu0 0
    %1996 = vmatpush2.bf16.msra.mxu0 0
    %1997 = vmatprep.subr.bf16.mxu0 0
    %1998 = vmatpush2.bf16.msra.mxu0 0
    %1999 = vmatprep.mubr.bf16.mxu0 0
    %2000 = vmatmul.mubr.bf16.gmra.mxu0 %v1895
    %v2001 = vpop.f32.mrf.mxu0
    %v2002 = vadd.f32 %v1917, %v2001
    %v2003 = vpop.f32.mrf.mxu0
    %v2004 = vpop.f32.mrf.mxu0
    %v2005 = vadd.f32 %v1917, %v2004
    %v2006 = vpop.f32.mrf.mxu0
    %2007 = vdwg.mxu0
    %2008 = vst [vmem:[%s7] sm:$0xff] %v2002
    %2009 = vst [vmem:[%s7 + $0x8] sm:$0xff] %v2005
    // Predicated region
    $region34: #{policy_net_forward.1} parent=1 // pred_check
      _
    $region35: #{policy_net_forward.1} parent=1 // pred_check_branch
      %2011 = sbr.rel (0) target = $region37
    $region36: #{policy_net_forward.1} parent=1 // pred_region
      _
    $region37: #{policy_net_forward.1} parent=1 // pred_fallthru
      _
    // Predicated region
    $region38: #{policy_net_forward.1} parent=1 // pred_check
      _
    $region39: #{policy_net_forward.1} parent=1 // pred_check_branch
      %2013 = sbr.rel (0) target = $region41
    $region40: #{policy_net_forward.1} parent=1 // pred_region
      _
    $region41: #{policy_net_forward.1} parent=1 // pred_fallthru
      _
    %2014 = vsyncpa [#allocation3], 1

</llo_original>
